<compile_context>
chip_gen: v5e
topology: v5e:2x2
jax: 0.10.0
libtpu: 0.0.40
codegen_flags: <defaults>
</compile_context>

<pallas_src>
import math
import numpy as np
import jax
import jax.numpy as jnp
from jax import lax
from jax.experimental import pallas as pl
from jax.experimental.pallas import tpu as pltpu

LN_EPS = 1e-5          # torch nn.LayerNorm default and GroupLayerNorm.eps
NEG_INF = -1e30


# ----------------------------------------------------------------------------
# device-dependent tuning knobs
# ----------------------------------------------------------------------------
def _chip_kind():
    try:
        return jax.devices()[0].device_kind.lower()
    except Exception:
        return ""


def _vmem_limit_bytes():
    kind = _chip_kind()
    if "v7" in kind or "tpu7" in kind:
        return 48 * 1024 * 1024           # v7x: 64 MiB physical / TC -> leave headroom
    if any(g in kind for g in ("v4", "v5", "v6")):
        return 96 * 1024 * 1024           # 128 MiB physical VMEM
    return 64 * 1024 * 1024


def _tile_targets():
    kind = _chip_kind()
    if "v7" in kind or "tpu7" in kind:
        return dict(tq=256, tk=256, tm=256, th=512)
    return dict(tq=256, tk=512, tm=512, th=1024)


def _pick_tile(n, target):
    """Largest tile <= target that divides n, preferring 128/16/8-aligned sizes."""
    if n <= target:
        return n
    for align in (128, 16, 8, 1):
        for t in range(target, align - 1, -1):
            if n % t == 0 and t % align == 0:
                return t
    return n


# ----------------------------------------------------------------------------
# optional single-buffering of grid-invariant operands (probed once)
# ----------------------------------------------------------------------------
_SINGLE_BUF_OK = None


def _probe_single_buffering():
    def _copy(x_ref, o_ref):
        o_ref[...] = x_ref[...]
    try:
        f = pl.pallas_call(
            _copy,
            grid=(2,),
            in_specs=[pl.BlockSpec((8, 128), lambda i: (0, 0),
                                   pipeline_mode=pl.Buffered(1))],
            out_specs=pl.BlockSpec((8, 128), lambda i: (i, 0)),
            out_shape=jax.ShapeDtypeStruct((16, 128), jnp.float32),
        )
        jax.block_until_ready(f(jnp.zeros((8, 128), jnp.float32)))
        return True
    except Exception:
        return False


def _const_spec(shape):
    """BlockSpec for a grid-invariant operand; single-buffered when supported,
    so large resident weight slabs are not double-buffered."""
    global _SINGLE_BUF_OK
    if _SINGLE_BUF_OK is None:
        _SINGLE_BUF_OK = _probe_single_buffering()
    index_map = lambda *args: (0,) * len(shape)
    if _SINGLE_BUF_OK:
        return pl.BlockSpec(shape, index_map, pipeline_mode=pl.Buffered(1))
    return pl.BlockSpec(shape, index_map)


# ----------------------------------------------------------------------------
# helpers shared by kernels and the pure-JAX reference
# ----------------------------------------------------------------------------
def _layernorm(x, w, b):
    m = jnp.mean(x, axis=-1, keepdims=True)
    v = jnp.mean((x - m) ** 2, axis=-1, keepdims=True)     # biased var (unbiased=False)
    return (x - m) * lax.rsqrt(v + LN_EPS) * w + b


def compute_lambdas(lq, lk, layer_idx):
    """AlternatingDiffHead.get_lambda for all heads. lq, lk: (H, n_terms, hs) -> (H, n_terms)."""
    dyn = 0.8 - 0.6 * jnp.exp(-0.3 * (jnp.float32(layer_idx) - 1.0))
    e = jnp.exp(lq * lk)                                          # (H, n_terms, hs)
    prev = jnp.concatenate([jnp.zeros_like(e[:, :1]), e[:, :-1]], axis=1)
    return jnp.mean(e - prev + dyn, axis=-1)                      # (H, n_terms)


# ----------------------------------------------------------------------------
# Pallas kernels
# ----------------------------------------------------------------------------
def qkv_kernel(x_ref, w_ref, b_ref, wqkv_ref, cos_ref, sin_ref, q_ref, k_ref, v_ref):
    """LN1 + fused Q/K/V projection + RoPE.  Q/K leave this kernel rotated, scaled, bf16."""
    B, tq, C = x_ref.shape
    Dq = q_ref.shape[-1]
    hd2 = cos_ref.shape[-1]
    hs = 2 * hd2
    n_seg = Dq // hs

    xn = _layernorm(x_ref[...], w_ref[...], b_ref[...])           # f32
    out = jnp.dot(xn.astype(jnp.bfloat16).reshape(B * tq, C), wqkv_ref[...],
                  preferred_element_type=jnp.float32).reshape(B, tq, -1)

    c = cos_ref[...][None]                                        # (1, tq, hd2)
    s = sin_ref[...][None]

    def rope(z):                                                  # split-half per segment
        pieces = []
        for seg in range(n_seg):
            z0 = z[:, :, seg * hs:seg * hs + hd2]
            z1 = z[:, :, seg * hs + hd2:(seg + 1) * hs]
            pieces.append(jnp.concatenate([z0 * c - z1 * s, z0 * s + z1 * c], axis=-1))
        return jnp.concatenate(pieces, axis=-1)

    q_ref[...] = rope(out[:, :, :Dq]).astype(jnp.bfloat16)
    k_ref[...] = rope(out[:, :, Dq:2 * Dq]).astype(jnp.bfloat16)
    v_ref[...] = out[:, :, 2 * Dq:].astype(jnp.bfloat16)


def attn_kernel(q_ref, k_ref, v_ref, x_ref, gw_ref, gb_ref, wp_ref, bp_ref, lam_ref,
                o_ref, m_sc, l_sc, acc_sc, cat_sc):
    """Flash-style alternating differential attention for one (query tile, kv tile)."""
    qi = pl.program_id(0)
    kj = pl.program_id(1)
    nk = pl.num_programs(1)
    B, tq, Dq = q_ref.shape
    tk = k_ref.shape[1]
    Dv = v_ref.shape[-1]
    H, n_terms = lam_ref.shape
    n_seg = H * n_terms
    hs = Dq // n_seg
    dv_h = Dv // H

    @pl.when(kj == 0)
    def _():
        m_sc[...] = jnp.full(m_sc.shape, NEG_INF, jnp.float32)
        l_sc[...] = jnp.zeros(l_sc.shape, jnp.float32)
        acc_sc[...] = jnp.zeros(acc_sc.shape, jnp.float32)

    # Skip KV tiles fully above the causal diagonal: no MXU FLOPs for masked keys.
    @pl.when(kj * tk <= qi * tq + (tq - 1))
    def _():
        row = lax.broadcasted_iota(jnp.int32, (tq, tk), 0) + qi * tq
        col = lax.broadcasted_iota(jnp.int32, (tq, tk), 1) + kj * tk
        causal = (row >= col)[None]                               # (1, tq, tk)
        q_all = q_ref[...]                                        # bf16, pre-rotated/scaled
        k_all = k_ref[...]
        v_all = v_ref[...]
        for h in range(H):
            v_h = v_all[:, :, h * dv_h:(h + 1) * dv_h]            # (B, tk, 2*hs)
            for t in range(n_terms):
                seg = h * n_terms + t
                s = jnp.einsum('bqd,bkd->bqk',
                               q_all[:, :, seg * hs:(seg + 1) * hs],
                               k_all[:, :, seg * hs:(seg + 1) * hs],
                               preferred_element_type=jnp.float32)
                s = jnp.where(causal, s, NEG_INF)
                m_prev = m_sc[seg]                                # (B, tq, 1)
                m_new = jnp.maximum(m_prev, jnp.max(s, axis=-1, keepdims=True))
                alpha = jnp.exp(m_prev - m_new)
                p = jnp.exp(s - m_new)
                l_sc[seg] = alpha * l_sc[seg] + jnp.sum(p, axis=-1, keepdims=True)
                acc_sc[seg] = alpha * acc_sc[seg] + jnp.einsum(
                    'bqk,bkd->bqd', p.astype(jnp.bfloat16), v_h,
                    preferred_element_type=jnp.float32)
                m_sc[seg] = m_new

    @pl.when(kj == nk - 1)
    def _():
        # combine signed terms per head (exact division, f32), write into lane slab
        for h in range(H):
            out_h = jnp.zeros((B, tq, dv_h), jnp.float32)
            for t in range(n_terms):
                seg = h * n_terms + t
                sign = 1.0 if t % 2 == 0 else -1.0
                out_h = out_h + acc_sc[seg] * ((sign * lam_ref[h, t]) / l_sc[seg])
            cat_sc[:, :, h * dv_h:(h + 1) * dv_h] = out_h
        normed = _layernorm(cat_sc[...], gw_ref[...], gb_ref[...]) * 0.2  # *(1-0.8)
        proj = jnp.dot(normed.astype(jnp.bfloat16).reshape(B * tq, Dv), wp_ref[...],
                       preferred_element_type=jnp.float32).reshape(B, tq, -1)
        o_ref[...] = x_ref[...] + proj + bp_ref[...]


def ffn_kernel(x_ref, w_ref, b_ref, wg_ref, bg_ref, wx_ref, bx_ref, wo_ref, bo_ref,
               o_ref, xn_sc, acc_sc):
    """LN2 + SwiGLU + output linear with the hidden dim tiled as a reduction axis."""
    j = pl.program_id(1)

    @pl.when(j == 0)
    def _():
        xn_sc[...] = _layernorm(x_ref[...], w_ref[...], b_ref[...]).astype(jnp.bfloat16)
        acc_sc[...] = jnp.zeros(acc_sc.shape, jnp.float32)

    xn = xn_sc[...]
    gate = jnp.dot(xn, wg_ref[...], preferred_element_type=jnp.float32) + bg_ref[...]
    xfrm = jnp.dot(xn, wx_ref[...], preferred_element_type=jnp.float32) + bx_ref[...]
    hidden = (gate * jax.nn.sigmoid(gate)) * xfrm                 # SiLU(gate) * xform
    acc_sc[...] += jnp.dot(hidden.astype(jnp.bfloat16), wo_ref[...],
                           preferred_element_type=jnp.float32)

    @pl.when(j == pl.num_programs(1) - 1)
    def _():
        o_ref[...] = x_ref[...] + acc_sc[...] + bo_ref[...]


# ----------------------------------------------------------------------------
# pallas_call wrappers
# ----------------------------------------------------------------------------
def _cparams(dims):
    return pltpu.CompilerParams(dimension_semantics=dims,
                                vmem_limit_bytes=_vmem_limit_bytes())


def qkv_call(x, ln_w, ln_b, wqkv, cos, sin, Dq, Dv, tq):
    B, T, C = x.shape
    hd2 = cos.shape[-1]
    Dtot = wqkv.shape[1]
    flops = 2 * B * T * C * Dtot
    bytes_acc = 4 * B * T * C + 2 * B * T * (2 * Dq + Dv) + 2 * C * Dtot
    return pl.pallas_call(
        qkv_kernel,
        grid=(T // tq,),
        in_specs=[
            pl.BlockSpec((B, tq, C), lambda i: (0, i, 0)),
            _const_spec((1, C)),
            _const_spec((1, C)),
            _const_spec((C, Dtot)),
            pl.BlockSpec((tq, hd2), lambda i: (i, 0)),
            pl.BlockSpec((tq, hd2), lambda i: (i, 0)),
        ],
        out_specs=[
            pl.BlockSpec((B, tq, Dq), lambda i: (0, i, 0)),
            pl.BlockSpec((B, tq, Dq), lambda i: (0, i, 0)),
            pl.BlockSpec((B, tq, Dv), lambda i: (0, i, 0)),
        ],
        out_shape=[
            jax.ShapeDtypeStruct((B, T, Dq), jnp.bfloat16),
            jax.ShapeDtypeStruct((B, T, Dq), jnp.bfloat16),
            jax.ShapeDtypeStruct((B, T, Dv), jnp.bfloat16),
        ],
        compiler_params=_cparams(("parallel",)),
        cost_estimate=pl.CostEstimate(flops=flops, transcendentals=0,
                                      bytes_accessed=bytes_acc),
    )(x, ln_w, ln_b, wqkv, cos, sin)


def attn_call(q_all, k_all, v_all, x, gn_w, gn_b, proj_w, proj_b, lambdas, tq, tk):
    B, T, C = x.shape
    Dq = q_all.shape[-1]
    Dv = v_all.shape[-1]
    H, n_terms = lambdas.shape
    n_seg = H * n_terms
    dv_h = Dv // H
    Pk, Pn = proj_w.shape
    nq, nk = T // tq, T // tk

    def q_map(i, j):
        return (0, i, 0)

    def kv_map(i, j):
        # Fully-masked KV tiles re-fetch the last useful tile; Pallas elides the copy
        # when the block index is unchanged, so skipped tiles also skip their DMA.
        limit = (i * tq + tq - 1) // tk
        return (0, jnp.minimum(j, limit), 0)

    flops = B * T * T * (Dq + Dv) + 2 * B * T * Pk * Pn           # ~causal half of QK/AV
    transc = B * T * T * n_seg // 2
    bytes_acc = 2 * B * T * (Dq + Dv) + 8 * B * T * C + 2 * Pk * Pn
    return pl.pallas_call(
        attn_kernel,
        grid=(nq, nk),
        in_specs=[
            pl.BlockSpec((B, tq, Dq), q_map),                     # q tile (bf16, rotated)
            pl.BlockSpec((B, tk, Dq), kv_map),                    # k tile (bf16, rotated)
            pl.BlockSpec((B, tk, Dv), kv_map),                    # v tile (bf16)
            pl.BlockSpec((B, tq, C), q_map),                      # residual tile
            _const_spec((1, C)),                                  # group-norm weight
            _const_spec((1, C)),                                  # group-norm bias
            _const_spec((Pk, Pn)),                                # proj weight (bf16)
            _const_spec((1, C)),                                  # proj bias
            pl.BlockSpec(memory_space=pltpu.MemorySpace.SMEM),    # lambdas (H, n_terms)
        ],
        out_specs=pl.BlockSpec((B, tq, C), q_map),
        out_shape=jax.ShapeDtypeStruct((B, T, C), jnp.float32),
        scratch_shapes=[
            pltpu.VMEM((n_seg, B, tq, 1), jnp.float32),           # running max
            pltpu.VMEM((n_seg, B, tq, 1), jnp.float32),           # running denominator
            pltpu.VMEM((n_seg, B, tq, dv_h), jnp.float32),        # unnormalized att@V
            pltpu.VMEM((B, tq, Dv), jnp.float32),                 # concatenated-head slab
        ],
        compiler_params=_cparams(("parallel", "arbitrary")),
        cost_estimate=pl.CostEstimate(flops=flops, transcendentals=transc,
                                      bytes_accessed=bytes_acc),
    )(q_all, k_all, v_all, x, gn_w, gn_b, proj_w, proj_b, lambdas)


def ffn_call(x, ln_w, ln_b, wg, bg, wx, bx, wo, bo, tm, th):
    N, C = x.shape
    Dh = wg.shape[1]
    flops = 6 * N * C * Dh
    transc = N * Dh
    bytes_acc = 8 * N * C + 2 * (2 * C * Dh + Dh * C)
    return pl.pallas_call(
        ffn_kernel,
        grid=(N // tm, Dh // th),
        in_specs=[
            pl.BlockSpec((tm, C), lambda i, j: (i, 0)),
            _const_spec((1, C)),
            _const_spec((1, C)),
            pl.BlockSpec((C, th), lambda i, j: (0, j)),           # gate weight chunk
            pl.BlockSpec((1, th), lambda i, j: (0, j)),           # gate bias chunk
            pl.BlockSpec((C, th), lambda i, j: (0, j)),           # xform weight chunk
            pl.BlockSpec((1, th), lambda i, j: (0, j)),           # xform bias chunk
            pl.BlockSpec((th, C), lambda i, j: (j, 0)),           # out-proj row chunk
            _const_spec((1, C)),                                  # out-proj bias
        ],
        out_specs=pl.BlockSpec((tm, C), lambda i, j: (i, 0)),
        out_shape=jax.ShapeDtypeStruct((N, C), jnp.float32),
        scratch_shapes=[
            pltpu.VMEM((tm, C), jnp.bfloat16),                    # cached LN2(x)
            pltpu.VMEM((tm, C), jnp.float32),                     # f32 output accumulator
        ],
        compiler_params=_cparams(("parallel", "arbitrary")),
        cost_estimate=pl.CostEstimate(flops=flops, transcendentals=transc,
                                      bytes_accessed=bytes_acc),
    )(x, ln_w, ln_b, wg, bg, wx, bx, wo, bo)


# ----------------------------------------------------------------------------
# one-time weight preparation (hoisted out of the forward pass)
# ----------------------------------------------------------------------------
def prepare_block_params(p, layer_idx):
    H, n_terms, C, hs = p['wq'].shape
    scale = 1.0 / math.sqrt(hs)
    # split-half RoPE layout ([even feats | odd feats]) baked into projection columns
    perm = jnp.concatenate([jnp.arange(0, hs, 2), jnp.arange(1, hs, 2)])
    wq_p = p['wq'][..., perm] * scale                             # fold 1/sqrt(hs) into q
    wk_p = p['wk'][..., perm]
    wq_c = jnp.transpose(wq_p, (2, 0, 1, 3)).reshape(C, H * n_terms * hs)
    wk_c = jnp.transpose(wk_p, (2, 0, 1, 3)).reshape(C, H * n_terms * hs)
    wv_c = jnp.transpose(p['wv'], (1, 0, 2)).reshape(C, H * 2 * hs)
    wqkv = jnp.concatenate([wq_c, wk_c, wv_c], axis=1).astype(jnp.bfloat16)
    return dict(
        ln1_w=p['ln1_w'], ln1_b=p['ln1_b'],
        wqkv=wqkv,
        lambdas=compute_lambdas(p['lq'], p['lk'], layer_idx),     # (H, n_terms)
        cos=p['cos'], sin=p['sin'],
        gn_w=p['gn_w'], gn_b=p['gn_b'],
        proj_w=p['proj_w'].astype(jnp.bfloat16), proj_b=p['proj_b'],
        ln2_w=p['ln2_w'], ln2_b=p['ln2_b'],
        wg=p['wg'].astype(jnp.bfloat16), bg=p['bg'],
        wx=p['wx'].astype(jnp.bfloat16), bx=p['bx'],
        wo=p['wo'].astype(jnp.bfloat16), bo=p['bo'],
    )


def block_forward(x, pp):
    B, T, C = x.shape
    H, n_terms = pp['lambdas'].shape
    hs = 2 * pp['cos'].shape[1]
    Dq = H * n_terms * hs
    Dv = H * 2 * hs
    tt = _tile_targets()

    tq = _pick_tile(T, tt['tq'])
    tk = _pick_tile(T, tt['tk'])
    q_all, k_all, v_all = qkv_call(x, pp['ln1_w'], pp['ln1_b'], pp['wqkv'],
                                   pp['cos'], pp['sin'], Dq, Dv, tq)
    x1 = attn_call(q_all, k_all, v_all, x, pp['gn_w'], pp['gn_b'],
                   pp['proj_w'], pp['proj_b'], pp['lambdas'], tq, tk)

    N = B * T
    Dh = pp['wg'].shape[1]
    tm = _pick_tile(N, tt['tm'])
    th = _pick_tile(Dh, tt['th'])
    x2 = ffn_call(x1.reshape(N, C), pp['ln2_w'], pp['ln2_b'],
                  pp['wg'], pp['bg'], pp['wx'], pp['bx'], pp['wo'], pp['bo'], tm, th)
    return x2.reshape(B, T, C)


# ----------------------------------------------------------------------------
# pure-JAX (f32) reference
# ----------------------------------------------------------------------------
def _rope_ref(x, cos, sin):
    x0 = x[..., 0::2]
    x1 = x[..., 1::2]
    y0 = x0 * cos - x1 * sin
    y1 = x0 * sin + x1 * cos
    return jnp.stack([y0, y1], axis=-1).reshape(x.shape)


def block_reference(x, p, layer_idx):
    H, n_terms, C, hs = p['wq'].shape
    B, T, _ = x.shape
    cos, sin = p['cos'], p['sin']
    lambdas = compute_lambdas(p['lq'], p['lk'], layer_idx)

    xn = _layernorm(x, p['ln1_w'], p['ln1_b'])
    mask = jnp.tril(jnp.ones((T, T), dtype=bool))
    head_outs = []
    for h in range(H):
        v = xn @ p['wv'][h]
        diff = jnp.zeros((B, T, T), jnp.float32)
        for t in range(n_terms):
            q = _rope_ref(xn @ p['wq'][h, t], cos, sin)
            k = _rope_ref(xn @ p['wk'][h, t], cos, sin)
            att = jnp.einsum('bih,bjh->bij', q, k) / math.sqrt(hs)
            att = jnp.where(mask, att, -jnp.inf)
            att = jax.nn.softmax(att, axis=-1)
            sign = 1.0 if t % 2 == 0 else -1.0
            diff = diff + sign * lambdas[h, t] * att
        head_outs.append(jnp.einsum('bij,bjd->bid', diff, v))
    cat = jnp.concatenate(head_outs, axis=-1)
    gn = _layernorm(cat, p['gn_w'], p['gn_b']) * 0.2
    x1 = x + gn @ p['proj_w'] + p['proj_b']
    xn2 = _layernorm(x1, p['ln2_w'], p['ln2_b'])
    gate = jax.nn.silu(xn2 @ p['wg'] + p['bg'])
    xform = xn2 @ p['wx'] + p['bx']
    return x1 + (gate * xform) @ p['wo'] + p['bo']


# ----------------------------------------------------------------------------
# deterministic parameter construction
# ----------------------------------------------------------------------------
def init_params(key, C, H, hs, n_terms, T, block_size):
    ks = jax.random.split(key, 24)

    def nrm(k, shape, scale):
        return (scale * jax.random.normal(k, shape)).astype(jnp.float32)

    # RoPE tables: precompute_freqs_cis(hs, block_size), then [:T]
    freqs = 1.0 / (10000.0 ** (jnp.arange(0, hs, 2, dtype=jnp.float32) / hs))
    angles = jnp.outer(jnp.arange(block_size, dtype=jnp.float32), freqs)

    p = dict(
        wq=nrm(ks[0], (H, n_terms, C, hs), C ** -0.5),
        wk=nrm(ks[1], (H, n_terms, C, hs), C ** -0.5),
        wv=nrm(ks[2], (H, C, 2 * hs), C ** -0.5),
        lq=nrm(ks[3], (H, n_terms, hs), 0.1),
        lk=nrm(ks[4], (H, n_terms, hs), 0.1),
        gn_w=1.0 + nrm(ks[5], (1, C), 0.1),
        gn_b=nrm(ks[6], (1, C), 0.1),
        proj_w=nrm(ks[7], (C, C), C ** -0.5),
        proj_b=nrm(ks[8], (1, C), 0.02),
        ln1_w=1.0 + nrm(ks[9], (1, C), 0.1),
        ln1_b=nrm(ks[10], (1, C), 0.1),
        ln2_w=1.0 + nrm(ks[11], (1, C), 0.1),
        ln2_b=nrm(ks[12], (1, C), 0.1),
        wg=nrm(ks[13], (C, 4 * C), C ** -0.5),
        bg=nrm(ks[14], (1, 4 * C), 0.02),
        wx=nrm(ks[15], (C, 4 * C), C ** -0.5),
        bx=nrm(ks[16], (1, 4 * C), 0.02),
        wo=nrm(ks[17], (4 * C, C), (4 * C) ** -0.5),
        bo=nrm(ks[18], (1, C), 0.02),
        cos=jnp.cos(angles)[:T],
        sin=jnp.sin(angles)[:T],
    )
    return p


if __name__ == "__main__":
    B, T = 2, 8
    n_embd, n_head, block_size, n_terms = 32, 2, 16, 4
    head_size = n_embd // (n_head * 2)            # 8
    layer_idx = 3.0

    key = jax.random.PRNGKey(0)
    kx, kp = jax.random.split(key)
    params = init_params(kp, n_embd, n_head, head_size, n_terms, T, block_size)
    x = jax.random.normal(kx, (B, T, n_embd), jnp.float32)

    prepped = prepare_block_params(params, layer_idx)
    y = block_forward(x, prepped)
    jax.block_until_ready(y)

    y_ref = block_reference(x, params, layer_idx)
    assert y.shape == (B, T, n_embd)
    assert bool(jnp.all(jnp.isfinite(y)))
    # bf16 MXU operands (f32 accumulate) vs fully-f32 reference -> slightly looser atol.
    np.testing.assert_allclose(np.asarray(y), np.asarray(y_ref), rtol=2e-2, atol=5e-2)
    print("KERNEL_OK")
</pallas_src>

<mosaic_0001>
module attributes {stable_mosaic.version = 11 : i64} {
  func.func @_copy(%arg0: i32, %arg1: memref<8x128xf32, #tpu.memory_space<vmem>>, %arg2: memref<8x128xf32, #tpu.memory_space<vmem>>) attributes {dimension_semantics = [#tpu.dimension_semantics<arbitrary>], iteration_bounds = array<i64: 2>, scalar_prefetch = 0 : i64, scratch_operands = 0 : i64, tpu.core_type = #tpu.core_type<tc>, window_params = [{pipeline_mode = #tpu.pipeline_mode<synchronous>, transform_indices = @transform_0, window_bounds = array<i64: 8, 128>}, {transform_indices = @transform_1, window_bounds = array<i64: 8, 128>}]} {
    %c0 = arith.constant 0 : index
    %c0_0 = arith.constant 0 : index
    %0 = vector.load %arg1[%c0, %c0_0] : memref<8x128xf32, #tpu.memory_space<vmem>>, vector<8x128xf32>
    %c0_1 = arith.constant 0 : index
    %c0_2 = arith.constant 0 : index
    %1 = vector.load %arg2[%c0_1, %c0_2] : memref<8x128xf32, #tpu.memory_space<vmem>>, vector<8x128xf32>
    tpu.vector_store %arg2[%c0_1, %c0_2], %0 {strides = array<i32>} : memref<8x128xf32, #tpu.memory_space<vmem>>, vector<8x128xf32>,
    return
  }
  func.func @transform_0(%arg0: i32) -> (i32, i32) {
    %c0_i32 = arith.constant 0 : i32
    %c0_i32_0 = arith.constant 0 : i32
    %c0_i32_1 = arith.constant 0 : i32
    return %c0_i32, %c0_i32_0 : i32, i32
  }
  func.func @transform_1(%arg0: i32) -> (i32, i32) {
    %c0_i32 = arith.constant 0 : i32
    %c0_i32_0 = arith.constant 0 : i32
    return %arg0, %c0_i32 : i32, i32
  }
}

module attributes {stable_mosaic.version = 11 : i64} {
  func.func @qkv_kernel(%arg0: i32, %arg1: memref<2x8x32xf32, #tpu.memory_space<vmem>>, %arg2: memref<1x32xf32, #tpu.memory_space<vmem>>, %arg3: memref<1x32xf32, #tpu.memory_space<vmem>>, %arg4: memref<32x160xbf16, #tpu.memory_space<vmem>>, %arg5: memref<8x4xf32, #tpu.memory_space<vmem>>, %arg6: memref<8x4xf32, #tpu.memory_space<vmem>>, %arg7: memref<2x8x64xbf16, #tpu.memory_space<vmem>>, %arg8: memref<2x8x64xbf16, #tpu.memory_space<vmem>>, %arg9: memref<2x8x32xbf16, #tpu.memory_space<vmem>>) attributes {dimension_semantics = [#tpu.dimension_semantics<parallel>], iteration_bounds = array<i64: 1>, scalar_prefetch = 0 : i64, scratch_operands = 0 : i64, tpu.core_type = #tpu.core_type<tc>, window_params = [{transform_indices = @transform_0, window_bounds = array<i64: 2, 8, 32>}, {pipeline_mode = #tpu.pipeline_mode<synchronous>, transform_indices = @transform_1, window_bounds = array<i64: 1, 32>}, {pipeline_mode = #tpu.pipeline_mode<synchronous>, transform_indices = @transform_2, window_bounds = array<i64: 1, 32>}, {pipeline_mode = #tpu.pipeline_mode<synchronous>, transform_indices = @transform_3, window_bounds = array<i64: 32, 160>}, {transform_indices = @transform_4, window_bounds = array<i64: 8, 4>}, {transform_indices = @transform_5, window_bounds = array<i64: 8, 4>}, {transform_indices = @transform_6, window_bounds = array<i64: 2, 8, 64>}, {transform_indices = @transform_7, window_bounds = array<i64: 2, 8, 64>}, {transform_indices = @transform_8, window_bounds = array<i64: 2, 8, 32>}]} {
    %c0 = arith.constant 0 : index
    %c0_0 = arith.constant 0 : index
    %c0_1 = arith.constant 0 : index
    %0 = vector.load %arg1[%c0, %c0_0, %c0_1] : memref<2x8x32xf32, #tpu.memory_space<vmem>>, vector<2x8x32xf32>
    %c0_2 = arith.constant 0 : index
    %c0_3 = arith.constant 0 : index
    %1 = vector.load %arg2[%c0_2, %c0_3] : memref<1x32xf32, #tpu.memory_space<vmem>>, vector<1x32xf32>
    %c0_4 = arith.constant 0 : index
    %c0_5 = arith.constant 0 : index
    %2 = vector.load %arg3[%c0_4, %c0_5] : memref<1x32xf32, #tpu.memory_space<vmem>>, vector<1x32xf32>
    %cst = arith.constant dense<0.000000e+00> : vector<2x8xf32>
    %3 = vector.multi_reduction <add>, %0, %cst [2] : vector<2x8x32xf32> to vector<2x8xf32>
    %4 = vector.shape_cast %3 : vector<2x8xf32> to vector<2x8x1xf32>
    %cst_6 = arith.constant 3.200000e+01 : f32
    %5 = vector.broadcast %cst_6 : f32 to vector<2x8x1xf32>
    %6 = arith.divf %4, %5 : vector<2x8x1xf32>
    %7 = vector.broadcast %6 : vector<2x8x1xf32> to vector<2x8x32xf32>
    %8 = arith.subf %0, %7 : vector<2x8x32xf32>
    %9 = arith.mulf %8, %8 : vector<2x8x32xf32>
    %cst_7 = arith.constant dense<0.000000e+00> : vector<2x8xf32>
    %10 = vector.multi_reduction <add>, %9, %cst_7 [2] : vector<2x8x32xf32> to vector<2x8xf32>
    %11 = vector.shape_cast %10 : vector<2x8xf32> to vector<2x8x1xf32>
    %cst_8 = arith.constant 3.200000e+01 : f32
    %12 = vector.broadcast %cst_8 : f32 to vector<2x8x1xf32>
    %13 = arith.divf %11, %12 : vector<2x8x1xf32>
    %14 = vector.broadcast %6 : vector<2x8x1xf32> to vector<2x8x32xf32>
    %15 = arith.subf %0, %14 : vector<2x8x32xf32>
    %cst_9 = arith.constant 9.99999974E-6 : f32
    %16 = vector.broadcast %cst_9 : f32 to vector<2x8x1xf32>
    %17 = arith.addf %13, %16 : vector<2x8x1xf32>
    %18 = math.rsqrt %17 : vector<2x8x1xf32>
    %19 = vector.broadcast %18 : vector<2x8x1xf32> to vector<2x8x32xf32>
    %20 = arith.mulf %15, %19 : vector<2x8x32xf32>
    %21 = vector.shape_cast %1 : vector<1x32xf32> to vector<1x1x32xf32>
    %22 = vector.broadcast %21 : vector<1x1x32xf32> to vector<2x8x32xf32>
    %23 = arith.mulf %20, %22 : vector<2x8x32xf32>
    %24 = vector.shape_cast %2 : vector<1x32xf32> to vector<1x1x32xf32>
    %25 = vector.broadcast %24 : vector<1x1x32xf32> to vector<2x8x32xf32>
    %26 = arith.addf %23, %25 : vector<2x8x32xf32>
    %27 = arith.truncf %26 : vector<2x8x32xf32> to vector<2x8x32xbf16>
    %28 = vector.shape_cast %27 : vector<2x8x32xbf16> to vector<16x32xbf16>
    %c0_10 = arith.constant 0 : index
    %c0_11 = arith.constant 0 : index
    %29 = vector.load %arg4[%c0_10, %c0_11] : memref<32x160xbf16, #tpu.memory_space<vmem>>, vector<32x160xbf16>
    %cst_12 = arith.constant dense<0.000000e+00> : vector<16x160xf32>
    %30 = tpu.matmul %28, %29, %cst_12 {dimension_numbers = #tpu.dot_dimension_numbers<[1], [0], [0], [1], [0, 0, 1, 1], [], []>} : vector<16x32xbf16>, vector<32x160xbf16>, vector<16x160xf32> -> vector<16x160xf32>
    %31 = vector.shape_cast %30 : vector<16x160xf32> to vector<2x8x160xf32>
    %c0_13 = arith.constant 0 : index
    %c0_14 = arith.constant 0 : index
    %32 = vector.load %arg5[%c0_13, %c0_14] : memref<8x4xf32, #tpu.memory_space<vmem>>, vector<8x4xf32>
    %33 = vector.shape_cast %32 : vector<8x4xf32> to vector<1x8x4xf32>
    %c0_15 = arith.constant 0 : index
    %c0_16 = arith.constant 0 : index
    %34 = vector.load %arg6[%c0_15, %c0_16] : memref<8x4xf32, #tpu.memory_space<vmem>>, vector<8x4xf32>
    %35 = vector.shape_cast %34 : vector<8x4xf32> to vector<1x8x4xf32>
    %36 = vector.extract_strided_slice %31 {offsets = [0, 0, 0], sizes = [2, 8, 64], strides = [1, 1, 1]} : vector<2x8x160xf32> to vector<2x8x64xf32>
    %37 = vector.extract_strided_slice %36 {offsets = [0, 0, 0], sizes = [2, 8, 4], strides = [1, 1, 1]} : vector<2x8x64xf32> to vector<2x8x4xf32>
    %38 = vector.extract_strided_slice %36 {offsets = [0, 0, 4], sizes = [2, 8, 4], strides = [1, 1, 1]} : vector<2x8x64xf32> to vector<2x8x4xf32>
    %39 = vector.broadcast %33 : vector<1x8x4xf32> to vector<2x8x4xf32>
    %40 = arith.mulf %37, %39 : vector<2x8x4xf32>
    %41 = vector.broadcast %35 : vector<1x8x4xf32> to vector<2x8x4xf32>
    %42 = arith.mulf %38, %41 : vector<2x8x4xf32>
    %43 = arith.subf %40, %42 : vector<2x8x4xf32>
    %44 = vector.broadcast %35 : vector<1x8x4xf32> to vector<2x8x4xf32>
    %45 = arith.mulf %37, %44 : vector<2x8x4xf32>
    %46 = vector.broadcast %33 : vector<1x8x4xf32> to vector<2x8x4xf32>
    %47 = arith.mulf %38, %46 : vector<2x8x4xf32>
    %48 = arith.addf %45, %47 : vector<2x8x4xf32>
    %49 = tpu.concatenate %43, %48 in 2 : vector<2x8x4xf32>, vector<2x8x4xf32> -> vector<2x8x8xf32>
    %50 = vector.extract_strided_slice %36 {offsets = [0, 0, 8], sizes = [2, 8, 4], strides = [1, 1, 1]} : vector<2x8x64xf32> to vector<2x8x4xf32>
    %51 = vector.extract_strided_slice %36 {offsets = [0, 0, 12], sizes = [2, 8, 4], strides = [1, 1, 1]} : vector<2x8x64xf32> to vector<2x8x4xf32>
    %52 = vector.broadcast %33 : vector<1x8x4xf32> to vector<2x8x4xf32>
    %53 = arith.mulf %50, %52 : vector<2x8x4xf32>
    %54 = vector.broadcast %35 : vector<1x8x4xf32> to vector<2x8x4xf32>
    %55 = arith.mulf %51, %54 : vector<2x8x4xf32>
    %56 = arith.subf %53, %55 : vector<2x8x4xf32>
    %57 = vector.broadcast %35 : vector<1x8x4xf32> to vector<2x8x4xf32>
    %58 = arith.mulf %50, %57 : vector<2x8x4xf32>
    %59 = vector.broadcast %33 : vector<1x8x4xf32> to vector<2x8x4xf32>
    %60 = arith.mulf %51, %59 : vector<2x8x4xf32>
    %61 = arith.addf %58, %60 : vector<2x8x4xf32>
    %62 = tpu.concatenate %56, %61 in 2 : vector<2x8x4xf32>, vector<2x8x4xf32> -> vector<2x8x8xf32>
    %63 = vector.extract_strided_slice %36 {offsets = [0, 0, 16], sizes = [2, 8, 4], strides = [1, 1, 1]} : vector<2x8x64xf32> to vector<2x8x4xf32>
    %64 = vector.extract_strided_slice %36 {offsets = [0, 0, 20], sizes = [2, 8, 4], strides = [1, 1, 1]} : vector<2x8x64xf32> to vector<2x8x4xf32>
    %65 = vector.broadcast %33 : vector<1x8x4xf32> to vector<2x8x4xf32>
    %66 = arith.mulf %63, %65 : vector<2x8x4xf32>
    %67 = vector.broadcast %35 : vector<1x8x4xf32> to vector<2x8x4xf32>
    %68 = arith.mulf %64, %67 : vector<2x8x4xf32>
    %69 = arith.subf %66, %68 : vector<2x8x4xf32>
    %70 = vector.broadcast %35 : vector<1x8x4xf32> to vector<2x8x4xf32>
    %71 = arith.mulf %63, %70 : vector<2x8x4xf32>
    %72 = vector.broadcast %33 : vector<1x8x4xf32> to vector<2x8x4xf32>
    %73 = arith.mulf %64, %72 : vector<2x8x4xf32>
    %74 = arith.addf %71, %73 : vector<2x8x4xf32>
    %75 = tpu.concatenate %69, %74 in 2 : vector<2x8x4xf32>, vector<2x8x4xf32> -> vector<2x8x8xf32>
    %76 = vector.extract_strided_slice %36 {offsets = [0, 0, 24], sizes = [2, 8, 4], strides = [1, 1, 1]} : vector<2x8x64xf32> to vector<2x8x4xf32>
    %77 = vector.extract_strided_slice %36 {offsets = [0, 0, 28], sizes = [2, 8, 4], strides = [1, 1, 1]} : vector<2x8x64xf32> to vector<2x8x4xf32>
    %78 = vector.broadcast %33 : vector<1x8x4xf32> to vector<2x8x4xf32>
    %79 = arith.mulf %76, %78 : vector<2x8x4xf32>
    %80 = vector.broadcast %35 : vector<1x8x4xf32> to vector<2x8x4xf32>
    %81 = arith.mulf %77, %80 : vector<2x8x4xf32>
    %82 = arith.subf %79, %81 : vector<2x8x4xf32>
    %83 = vector.broadcast %35 : vector<1x8x4xf32> to vector<2x8x4xf32>
    %84 = arith.mulf %76, %83 : vector<2x8x4xf32>
    %85 = vector.broadcast %33 : vector<1x8x4xf32> to vector<2x8x4xf32>
    %86 = arith.mulf %77, %85 : vector<2x8x4xf32>
    %87 = arith.addf %84, %86 : vector<2x8x4xf32>
    %88 = tpu.concatenate %82, %87 in 2 : vector<2x8x4xf32>, vector<2x8x4xf32> -> vector<2x8x8xf32>
    %89 = vector.extract_strided_slice %36 {offsets = [0, 0, 32], sizes = [2, 8, 4], strides = [1, 1, 1]} : vector<2x8x64xf32> to vector<2x8x4xf32>
    %90 = vector.extract_strided_slice %36 {offsets = [0, 0, 36], sizes = [2, 8, 4], strides = [1, 1, 1]} : vector<2x8x64xf32> to vector<2x8x4xf32>
    %91 = vector.broadcast %33 : vector<1x8x4xf32> to vector<2x8x4xf32>
    %92 = arith.mulf %89, %91 : vector<2x8x4xf32>
    %93 = vector.broadcast %35 : vector<1x8x4xf32> to vector<2x8x4xf32>
    %94 = arith.mulf %90, %93 : vector<2x8x4xf32>
    %95 = arith.subf %92, %94 : vector<2x8x4xf32>
    %96 = vector.broadcast %35 : vector<1x8x4xf32> to vector<2x8x4xf32>
    %97 = arith.mulf %89, %96 : vector<2x8x4xf32>
    %98 = vector.broadcast %33 : vector<1x8x4xf32> to vector<2x8x4xf32>
    %99 = arith.mulf %90, %98 : vector<2x8x4xf32>
    %100 = arith.addf %97, %99 : vector<2x8x4xf32>
    %101 = tpu.concatenate %95, %100 in 2 : vector<2x8x4xf32>, vector<2x8x4xf32> -> vector<2x8x8xf32>
    %102 = vector.extract_strided_slice %36 {offsets = [0, 0, 40], sizes = [2, 8, 4], strides = [1, 1, 1]} : vector<2x8x64xf32> to vector<2x8x4xf32>
    %103 = vector.extract_strided_slice %36 {offsets = [0, 0, 44], sizes = [2, 8, 4], strides = [1, 1, 1]} : vector<2x8x64xf32> to vector<2x8x4xf32>
    %104 = vector.broadcast %33 : vector<1x8x4xf32> to vector<2x8x4xf32>
    %105 = arith.mulf %102, %104 : vector<2x8x4xf32>
    %106 = vector.broadcast %35 : vector<1x8x4xf32> to vector<2x8x4xf32>
    %107 = arith.mulf %103, %106 : vector<2x8x4xf32>
    %108 = arith.subf %105, %107 : vector<2x8x4xf32>
    %109 = vector.broadcast %35 : vector<1x8x4xf32> to vector<2x8x4xf32>
    %110 = arith.mulf %102, %109 : vector<2x8x4xf32>
    %111 = vector.broadcast %33 : vector<1x8x4xf32> to vector<2x8x4xf32>
    %112 = arith.mulf %103, %111 : vector<2x8x4xf32>
    %113 = arith.addf %110, %112 : vector<2x8x4xf32>
    %114 = tpu.concatenate %108, %113 in 2 : vector<2x8x4xf32>, vector<2x8x4xf32> -> vector<2x8x8xf32>
    %115 = vector.extract_strided_slice %36 {offsets = [0, 0, 48], sizes = [2, 8, 4], strides = [1, 1, 1]} : vector<2x8x64xf32> to vector<2x8x4xf32>
    %116 = vector.extract_strided_slice %36 {offsets = [0, 0, 52], sizes = [2, 8, 4], strides = [1, 1, 1]} : vector<2x8x64xf32> to vector<2x8x4xf32>
    %117 = vector.broadcast %33 : vector<1x8x4xf32> to vector<2x8x4xf32>
    %118 = arith.mulf %115, %117 : vector<2x8x4xf32>
    %119 = vector.broadcast %35 : vector<1x8x4xf32> to vector<2x8x4xf32>
    %120 = arith.mulf %116, %119 : vector<2x8x4xf32>
    %121 = arith.subf %118, %120 : vector<2x8x4xf32>
    %122 = vector.broadcast %35 : vector<1x8x4xf32> to vector<2x8x4xf32>
    %123 = arith.mulf %115, %122 : vector<2x8x4xf32>
    %124 = vector.broadcast %33 : vector<1x8x4xf32> to vector<2x8x4xf32>
    %125 = arith.mulf %116, %124 : vector<2x8x4xf32>
    %126 = arith.addf %123, %125 : vector<2x8x4xf32>
    %127 = tpu.concatenate %121, %126 in 2 : vector<2x8x4xf32>, vector<2x8x4xf32> -> vector<2x8x8xf32>
    %128 = vector.extract_strided_slice %36 {offsets = [0, 0, 56], sizes = [2, 8, 4], strides = [1, 1, 1]} : vector<2x8x64xf32> to vector<2x8x4xf32>
    %129 = vector.extract_strided_slice %36 {offsets = [0, 0, 60], sizes = [2, 8, 4], strides = [1, 1, 1]} : vector<2x8x64xf32> to vector<2x8x4xf32>
    %130 = vector.broadcast %33 : vector<1x8x4xf32> to vector<2x8x4xf32>
    %131 = arith.mulf %128, %130 : vector<2x8x4xf32>
    %132 = vector.broadcast %35 : vector<1x8x4xf32> to vector<2x8x4xf32>
    %133 = arith.mulf %129, %132 : vector<2x8x4xf32>
    %134 = arith.subf %131, %133 : vector<2x8x4xf32>
    %135 = vector.broadcast %35 : vector<1x8x4xf32> to vector<2x8x4xf32>
    %136 = arith.mulf %128, %135 : vector<2x8x4xf32>
    %137 = vector.broadcast %33 : vector<1x8x4xf32> to vector<2x8x4xf32>
    %138 = arith.mulf %129, %137 : vector<2x8x4xf32>
    %139 = arith.addf %136, %138 : vector<2x8x4xf32>
    %140 = tpu.concatenate %134, %139 in 2 : vector<2x8x4xf32>, vector<2x8x4xf32> -> vector<2x8x8xf32>
    %141 = tpu.concatenate %49, %62, %75, %88, %101, %114, %127, %140 in 2 : vector<2x8x8xf32>, vector<2x8x8xf32>, vector<2x8x8xf32>, vector<2x8x8xf32>, vector<2x8x8xf32>, vector<2x8x8xf32>, vector<2x8x8xf32>, vector<2x8x8xf32> -> vector<2x8x64xf32>
    %142 = arith.truncf %141 : vector<2x8x64xf32> to vector<2x8x64xbf16>
    %c0_17 = arith.constant 0 : index
    %c0_18 = arith.constant 0 : index
    %c0_19 = arith.constant 0 : index
    %143 = vector.load %arg7[%c0_17, %c0_18, %c0_19] : memref<2x8x64xbf16, #tpu.memory_space<vmem>>, vector<2x8x64xbf16>
    tpu.vector_store %arg7[%c0_17, %c0_18, %c0_19], %142 {strides = array<i32>} : memref<2x8x64xbf16, #tpu.memory_space<vmem>>, vector<2x8x64xbf16>,
    %144 = vector.extract_strided_slice %31 {offsets = [0, 0, 64], sizes = [2, 8, 64], strides = [1, 1, 1]} : vector<2x8x160xf32> to vector<2x8x64xf32>
    %145 = vector.extract_strided_slice %144 {offsets = [0, 0, 0], sizes = [2, 8, 4], strides = [1, 1, 1]} : vector<2x8x64xf32> to vector<2x8x4xf32>
    %146 = vector.extract_strided_slice %144 {offsets = [0, 0, 4], sizes = [2, 8, 4], strides = [1, 1, 1]} : vector<2x8x64xf32> to vector<2x8x4xf32>
    %147 = vector.broadcast %33 : vector<1x8x4xf32> to vector<2x8x4xf32>
    %148 = arith.mulf %145, %147 : vector<2x8x4xf32>
    %149 = vector.broadcast %35 : vector<1x8x4xf32> to vector<2x8x4xf32>
    %150 = arith.mulf %146, %149 : vector<2x8x4xf32>
    %151 = arith.subf %148, %150 : vector<2x8x4xf32>
    %152 = vector.broadcast %35 : vector<1x8x4xf32> to vector<2x8x4xf32>
    %153 = arith.mulf %145, %152 : vector<2x8x4xf32>
    %154 = vector.broadcast %33 : vector<1x8x4xf32> to vector<2x8x4xf32>
    %155 = arith.mulf %146, %154 : vector<2x8x4xf32>
    %156 = arith.addf %153, %155 : vector<2x8x4xf32>
    %157 = tpu.concatenate %151, %156 in 2 : vector<2x8x4xf32>, vector<2x8x4xf32> -> vector<2x8x8xf32>
    %158 = vector.extract_strided_slice %144 {offsets = [0, 0, 8], sizes = [2, 8, 4], strides = [1, 1, 1]} : vector<2x8x64xf32> to vector<2x8x4xf32>
    %159 = vector.extract_strided_slice %144 {offsets = [0, 0, 12], sizes = [2, 8, 4], strides = [1, 1, 1]} : vector<2x8x64xf32> to vector<2x8x4xf32>
    %160 = vector.broadcast %33 : vector<1x8x4xf32> to vector<2x8x4xf32>
    %161 = arith.mulf %158, %160 : vector<2x8x4xf32>
    %162 = vector.broadcast %35 : vector<1x8x4xf32> to vector<2x8x4xf32>
    %163 = arith.mulf %159, %162 : vector<2x8x4xf32>
    %164 = arith.subf %161, %163 : vector<2x8x4xf32>
    %165 = vector.broadcast %35 : vector<1x8x4xf32> to vector<2x8x4xf32>
    %166 = arith.mulf %158, %165 : vector<2x8x4xf32>
    %167 = vector.broadcast %33 : vector<1x8x4xf32> to vector<2x8x4xf32>
    %168 = arith.mulf %159, %167 : vector<2x8x4xf32>
    %169 = arith.addf %166, %168 : vector<2x8x4xf32>
    %170 = tpu.concatenate %164, %169 in 2 : vector<2x8x4xf32>, vector<2x8x4xf32> -> vector<2x8x8xf32>
    %171 = vector.extract_strided_slice %144 {offsets = [0, 0, 16], sizes = [2, 8, 4], strides = [1, 1, 1]} : vector<2x8x64xf32> to vector<2x8x4xf32>
    %172 = vector.extract_strided_slice %144 {offsets = [0, 0, 20], sizes = [2, 8, 4], strides = [1, 1, 1]} : vector<2x8x64xf32> to vector<2x8x4xf32>
    %173 = vector.broadcast %33 : vector<1x8x4xf32> to vector<2x8x4xf32>
    %174 = arith.mulf %171, %173 : vector<2x8x4xf32>
    %175 = vector.broadcast %35 : vector<1x8x4xf32> to vector<2x8x4xf32>
    %176 = arith.mulf %172, %175 : vector<2x8x4xf32>
    %177 = arith.subf %174, %176 : vector<2x8x4xf32>
    %178 = vector.broadcast %35 : vector<1x8x4xf32> to vector<2x8x4xf32>
    %179 = arith.mulf %171, %178 : vector<2x8x4xf32>
    %180 = vector.broadcast %33 : vector<1x8x4xf32> to vector<2x8x4xf32>
    %181 = arith.mulf %172, %180 : vector<2x8x4xf32>
    %182 = arith.addf %179, %181 : vector<2x8x4xf32>
    %183 = tpu.concatenate %177, %182 in 2 : vector<2x8x4xf32>, vector<2x8x4xf32> -> vector<2x8x8xf32>
    %184 = vector.extract_strided_slice %144 {offsets = [0, 0, 24], sizes = [2, 8, 4], strides = [1, 1, 1]} : vector<2x8x64xf32> to vector<2x8x4xf32>
    %185 = vector.extract_strided_slice %144 {offsets = [0, 0, 28], sizes = [2, 8, 4], strides = [1, 1, 1]} : vector<2x8x64xf32> to vector<2x8x4xf32>
    %186 = vector.broadcast %33 : vector<1x8x4xf32> to vector<2x8x4xf32>
    %187 = arith.mulf %184, %186 : vector<2x8x4xf32>
    %188 = vector.broadcast %35 : vector<1x8x4xf32> to vector<2x8x4xf32>
    %189 = arith.mulf %185, %188 : vector<2x8x4xf32>
    %190 = arith.subf %187, %189 : vector<2x8x4xf32>
    %191 = vector.broadcast %35 : vector<1x8x4xf32> to vector<2x8x4xf32>
    %192 = arith.mulf %184, %191 : vector<2x8x4xf32>
    %193 = vector.broadcast %33 : vector<1x8x4xf32> to vector<2x8x4xf32>
    %194 = arith.mulf %185, %193 : vector<2x8x4xf32>
    %195 = arith.addf %192, %194 : vector<2x8x4xf32>
    %196 = tpu.concatenate %190, %195 in 2 : vector<2x8x4xf32>, vector<2x8x4xf32> -> vector<2x8x8xf32>
    %197 = vector.extract_strided_slice %144 {offsets = [0, 0, 32], sizes = [2, 8, 4], strides = [1, 1, 1]} : vector<2x8x64xf32> to vector<2x8x4xf32>
    %198 = vector.extract_strided_slice %144 {offsets = [0, 0, 36], sizes = [2, 8, 4], strides = [1, 1, 1]} : vector<2x8x64xf32> to vector<2x8x4xf32>
    %199 = vector.broadcast %33 : vector<1x8x4xf32> to vector<2x8x4xf32>
    %200 = arith.mulf %197, %199 : vector<2x8x4xf32>
    %201 = vector.broadcast %35 : vector<1x8x4xf32> to vector<2x8x4xf32>
    %202 = arith.mulf %198, %201 : vector<2x8x4xf32>
    %203 = arith.subf %200, %202 : vector<2x8x4xf32>
    %204 = vector.broadcast %35 : vector<1x8x4xf32> to vector<2x8x4xf32>
    %205 = arith.mulf %197, %204 : vector<2x8x4xf32>
    %206 = vector.broadcast %33 : vector<1x8x4xf32> to vector<2x8x4xf32>
    %207 = arith.mulf %198, %206 : vector<2x8x4xf32>
    %208 = arith.addf %205, %207 : vector<2x8x4xf32>
    %209 = tpu.concatenate %203, %208 in 2 : vector<2x8x4xf32>, vector<2x8x4xf32> -> vector<2x8x8xf32>
    %210 = vector.extract_strided_slice %144 {offsets = [0, 0, 40], sizes = [2, 8, 4], strides = [1, 1, 1]} : vector<2x8x64xf32> to vector<2x8x4xf32>
    %211 = vector.extract_strided_slice %144 {offsets = [0, 0, 44], sizes = [2, 8, 4], strides = [1, 1, 1]} : vector<2x8x64xf32> to vector<2x8x4xf32>
    %212 = vector.broadcast %33 : vector<1x8x4xf32> to vector<2x8x4xf32>
    %213 = arith.mulf %210, %212 : vector<2x8x4xf32>
    %214 = vector.broadcast %35 : vector<1x8x4xf32> to vector<2x8x4xf32>
    %215 = arith.mulf %211, %214 : vector<2x8x4xf32>
    %216 = arith.subf %213, %215 : vector<2x8x4xf32>
    %217 = vector.broadcast %35 : vector<1x8x4xf32> to vector<2x8x4xf32>
    %218 = arith.mulf %210, %217 : vector<2x8x4xf32>
    %219 = vector.broadcast %33 : vector<1x8x4xf32> to vector<2x8x4xf32>
    %220 = arith.mulf %211, %219 : vector<2x8x4xf32>
    %221 = arith.addf %218, %220 : vector<2x8x4xf32>
    %222 = tpu.concatenate %216, %221 in 2 : vector<2x8x4xf32>, vector<2x8x4xf32> -> vector<2x8x8xf32>
    %223 = vector.extract_strided_slice %144 {offsets = [0, 0, 48], sizes = [2, 8, 4], strides = [1, 1, 1]} : vector<2x8x64xf32> to vector<2x8x4xf32>
    %224 = vector.extract_strided_slice %144 {offsets = [0, 0, 52], sizes = [2, 8, 4], strides = [1, 1, 1]} : vector<2x8x64xf32> to vector<2x8x4xf32>
    %225 = vector.broadcast %33 : vector<1x8x4xf32> to vector<2x8x4xf32>
    %226 = arith.mulf %223, %225 : vector<2x8x4xf32>
    %227 = vector.broadcast %35 : vector<1x8x4xf32> to vector<2x8x4xf32>
    %228 = arith.mulf %224, %227 : vector<2x8x4xf32>
    %229 = arith.subf %226, %228 : vector<2x8x4xf32>
    %230 = vector.broadcast %35 : vector<1x8x4xf32> to vector<2x8x4xf32>
    %231 = arith.mulf %223, %230 : vector<2x8x4xf32>
    %232 = vector.broadcast %33 : vector<1x8x4xf32> to vector<2x8x4xf32>
    %233 = arith.mulf %224, %232 : vector<2x8x4xf32>
    %234 = arith.addf %231, %233 : vector<2x8x4xf32>
    %235 = tpu.concatenate %229, %234 in 2 : vector<2x8x4xf32>, vector<2x8x4xf32> -> vector<2x8x8xf32>
    %236 = vector.extract_strided_slice %144 {offsets = [0, 0, 56], sizes = [2, 8, 4], strides = [1, 1, 1]} : vector<2x8x64xf32> to vector<2x8x4xf32>
    %237 = vector.extract_strided_slice %144 {offsets = [0, 0, 60], sizes = [2, 8, 4], strides = [1, 1, 1]} : vector<2x8x64xf32> to vector<2x8x4xf32>
    %238 = vector.broadcast %33 : vector<1x8x4xf32> to vector<2x8x4xf32>
    %239 = arith.mulf %236, %238 : vector<2x8x4xf32>
    %240 = vector.broadcast %35 : vector<1x8x4xf32> to vector<2x8x4xf32>
    %241 = arith.mulf %237, %240 : vector<2x8x4xf32>
    %242 = arith.subf %239, %241 : vector<2x8x4xf32>
    %243 = vector.broadcast %35 : vector<1x8x4xf32> to vector<2x8x4xf32>
    %244 = arith.mulf %236, %243 : vector<2x8x4xf32>
    %245 = vector.broadcast %33 : vector<1x8x4xf32> to vector<2x8x4xf32>
    %246 = arith.mulf %237, %245 : vector<2x8x4xf32>
    %247 = arith.addf %244, %246 : vector<2x8x4xf32>
    %248 = tpu.concatenate %242, %247 in 2 : vector<2x8x4xf32>, vector<2x8x4xf32> -> vector<2x8x8xf32>
    %249 = tpu.concatenate %157, %170, %183, %196, %209, %222, %235, %248 in 2 : vector<2x8x8xf32>, vector<2x8x8xf32>, vector<2x8x8xf32>, vector<2x8x8xf32>, vector<2x8x8xf32>, vector<2x8x8xf32>, vector<2x8x8xf32>, vector<2x8x8xf32> -> vector<2x8x64xf32>
    %250 = arith.truncf %249 : vector<2x8x64xf32> to vector<2x8x64xbf16>
    %c0_20 = arith.constant 0 : index
    %c0_21 = arith.constant 0 : index
    %c0_22 = arith.constant 0 : index
    %251 = vector.load %arg8[%c0_20, %c0_21, %c0_22] : memref<2x8x64xbf16, #tpu.memory_space<vmem>>, vector<2x8x64xbf16>
    tpu.vector_store %arg8[%c0_20, %c0_21, %c0_22], %250 {strides = array<i32>} : memref<2x8x64xbf16, #tpu.memory_space<vmem>>, vector<2x8x64xbf16>,
    %252 = vector.extract_strided_slice %31 {offsets = [0, 0, 128], sizes = [2, 8, 32], strides = [1, 1, 1]} : vector<2x8x160xf32> to vector<2x8x32xf32>
    %253 = arith.truncf %252 : vector<2x8x32xf32> to vector<2x8x32xbf16>
    %c0_23 = arith.constant 0 : index
    %c0_24 = arith.constant 0 : index
    %c0_25 = arith.constant 0 : index
    %254 = vector.load %arg9[%c0_23, %c0_24, %c0_25] : memref<2x8x32xbf16, #tpu.memory_space<vmem>>, vector<2x8x32xbf16>
    tpu.vector_store %arg9[%c0_23, %c0_24, %c0_25], %253 {strides = array<i32>} : memref<2x8x32xbf16, #tpu.memory_space<vmem>>, vector<2x8x32xbf16>,
    return
  }
  func.func @transform_0(%arg0: i32) -> (i32, i32, i32) {
    %c0_i32 = arith.constant 0 : i32
    %c0_i32_0 = arith.constant 0 : i32
    %c0_i32_1 = arith.constant 0 : i32
    return %c0_i32, %arg0, %c0_i32_0 : i32, i32, i32
  }
  func.func @transform_1(%arg0: i32) -> (i32, i32) {
    %c0_i32 = arith.constant 0 : i32
    %c0_i32_0 = arith.constant 0 : i32
    %c0_i32_1 = arith.constant 0 : i32
    return %c0_i32, %c0_i32_0 : i32, i32
  }
  func.func @transform_2(%arg0: i32) -> (i32, i32) {
    %c0_i32 = arith.constant 0 : i32
    %c0_i32_0 = arith.constant 0 : i32
    %c0_i32_1 = arith.constant 0 : i32
    return %c0_i32, %c0_i32_0 : i32, i32
  }
  func.func @transform_3(%arg0: i32) -> (i32, i32) {
    %c0_i32 = arith.constant 0 : i32
    %c0_i32_0 = arith.constant 0 : i32
    %c0_i32_1 = arith.constant 0 : i32
    return %c0_i32, %c0_i32_0 : i32, i32
  }
  func.func @transform_4(%arg0: i32) -> (i32, i32) {
    %c0_i32 = arith.constant 0 : i32
    %c0_i32_0 = arith.constant 0 : i32
    return %arg0, %c0_i32 : i32, i32
  }
  func.func @transform_5(%arg0: i32) -> (i32, i32) {
    %c0_i32 = arith.constant 0 : i32
    %c0_i32_0 = arith.constant 0 : i32
    return %arg0, %c0_i32 : i32, i32
  }
  func.func @transform_6(%arg0: i32) -> (i32, i32, i32) {
    %c0_i32 = arith.constant 0 : i32
    %c0_i32_0 = arith.constant 0 : i32
    %c0_i32_1 = arith.constant 0 : i32
    return %c0_i32, %arg0, %c0_i32_0 : i32, i32, i32
  }
  func.func @transform_7(%arg0: i32) -> (i32, i32, i32) {
    %c0_i32 = arith.constant 0 : i32
    %c0_i32_0 = arith.constant 0 : i32
    %c0_i32_1 = arith.constant 0 : i32
    return %c0_i32, %arg0, %c0_i32_0 : i32, i32, i32
  }
  func.func @transform_8(%arg0: i32) -> (i32, i32, i32) {
    %c0_i32 = arith.constant 0 : i32
    %c0_i32_0 = arith.constant 0 : i32
    %c0_i32_1 = arith.constant 0 : i32
    return %c0_i32, %arg0, %c0_i32_0 : i32, i32, i32
  }
}

</mosaic_0001>

<llo_original>
// kernel: tpu_custom_call.1
$region0: #{tpu_custom_call.1}
  #allocation0 [shape = 'u32[]', space=smem, size = 0x4, offset = 0x4, fixed_abs, tag = 'smem constant byte address 0x4 - core index']
  #allocation1 [shape = 'u32[72,128]{1,0:T(1,128)}', space=vmem, size = 0x9000, scoped, tag = 'internal scratch']
  %s0 = inlined_call_operand.hbm [shape: f32[8,128], index: 0, kind: input, shape index: {}]
  %s1 = inlined_call_operand.hbm [shape: f32[16,128], index: 1, kind: output, shape index: {}]
  %s2 = sld [smem:[#allocation0]]
  $region41: #{tpu_custom_call.1} parent=0
    _
  %s4 = ssub.s32 1, %s2
  %s5 = scalar_select 0, %s4, %s2
  $region1: #{tpu_custom_call.1} parent=0
    #allocation2 [shape = 'u8[4096]{0}', space=vmem, size = 0x1000, scoped, tag = 'input window, operand 0, single buffered']
    #allocation3 [shape = 's32[2]{0}', space=sflag, size = 0x8, scoped, tag = 'scoped memory for tpu_custom_call.1']
    #allocation4 [shape = 's32[2]{0}', space=sflag, size = 0x8, scoped, tag = 'scoped memory for tpu_custom_call.1']
    #allocation5 [shape = 'u8[8192]{0}', space=vmem, size = 0x2000, scoped, tag = 'output window, operand 0']
    %6 = vsyncpa [#allocation3], 0
    %7 = vsyncpa [#allocation4], 0
    %s8 = scalar_lea.sflag [#allocation4], 1
    %9 = vsyncpa %s8, 0
    loop: start=0, step=1, limit=4
    $region2: #{tpu_custom_call.1} parent=1 // loop_pre_header
      _
    $region3: #{tpu_custom_call.1} parent=1 // loop_header
      %s11 = sphi 0, %s15
      %p12 = scmp.ge.s32.totalorder %s11, 4
      %s19 = sphi 0, %s19
      %s21 = sphi 0, %s19
      %s22 = sphi 0, %s21
      %s36 = sphi 0, %s22
      %s42 = sphi 0, %s44
      %s45 = sphi 0, %s42
      %s46 = sphi 0, %s45
      %s62 = sphi 0, %s46
    $region4: #{tpu_custom_call.1} parent=1 // loop_header_branch
      %14 = sbr.rel (%p12) target = $region8
    $region5: #{tpu_custom_call.1} parent=1 // loop_body
      %s16 = ssub.s32 %s11, 1
      %s17 = ssub.s32 %s11, 2
      %s18 = sadd.s32 %s11, 1
      %s20 = sadd.s32 %s19, 1
      %p23 = scmp.eq.s32.totalorder %s11, 1
      %p24 = scmp.ne.s32.totalorder %s19, %s21
      %p25 = scmp.eq.s32.totalorder %s11, 0
      %p26 = por %p24, %p25
      %p27 = scmp.ne.s32.totalorder %s19, %s21
      %p28 = scmp.eq.s32.totalorder %s16, 1
      %p29 = por %p27, %p28
      %p30 = scmp.ne.s32.totalorder %s21, %s22
      %p31 = scmp.eq.s32.totalorder %s16, 0
      %p32 = por %p30, %p31
      %p33 = scmp.ne.s32.totalorder %s21, %s22
      %p34 = scmp.eq.s32.totalorder %s17, 1
      %p35 = por %p33, %p34
      %p37 = scmp.ne.s32.totalorder %s22, %s36
      %p38 = scmp.eq.s32.totalorder %s17, 0
      %p39 = por %p37, %p38
      %s40 = ssub.s32 %s11, %s18
      %p41 = scmp.eq.s32.totalorder %s40, 0
      %s43 = sadd.s32 %s42, 1
      %s44 = scalar_select %p41, %s42, %s43
      %p47 = pneg %p41
      %p48 = scmp.eq.s32.totalorder %s11, 1
      %p49 = por %p47, %p48
      %p50 = scmp.ne.s32.totalorder %s42, %s45
      %p51 = scmp.eq.s32.totalorder %s11, 0
      %p52 = por %p50, %p51
      %p53 = scmp.ne.s32.totalorder %s42, %s45
      %p54 = scmp.eq.s32.totalorder %s16, 1
      %p55 = por %p53, %p54
      %p56 = scmp.ne.s32.totalorder %s45, %s46
      %p57 = scmp.eq.s32.totalorder %s16, 0
      %p58 = por %p56, %p57
      %p59 = scmp.ne.s32.totalorder %s45, %s46
      %p60 = scmp.eq.s32.totalorder %s17, 1
      %p61 = por %p59, %p60
      %p63 = scmp.ne.s32.totalorder %s46, %s62
      %p64 = scmp.eq.s32.totalorder %s17, 0
      %p65 = por %p63, %p64
      %p66 = scmp.le.s32.totalorder 1, %s11
      %p67 = scmp.lt.s32.totalorder %s11, 3
      %p68 = pnand %p66, %p67
      %p69 = pneg %p68
      // Predicated region
      $region9: #{tpu_custom_call.1} parent=5 // pred_check
        _
      $region10: #{tpu_custom_call.1} parent=5 // pred_check_branch
        %71 = sbr.rel (%p68) target = $region12
      $region11: #{tpu_custom_call.1} parent=5 // pred_region
        %s72 = ssub.s32 %s11, 1
        // Predicated region
        $region13: #{tpu_custom_call.1} parent=11 // pred_check
          %p73 = pneg %p32
        $region14: #{tpu_custom_call.1} parent=11 // pred_check_branch
          %75 = sbr.rel (%p73) target = $region16
        $region15: #{tpu_custom_call.1} parent=11 // pred_region
          %77 = vsyncadd [#allocation3], 0
          %s79 = sshll.u32 %s0, 4
          %s80 = int_to_ptr.hbm [resolvable:$true] %s79
          %s81 = sshll.u32 [#allocation2], 4
          %s82 = int_to_ptr.vmem [resolvable:$true] %s81
          %84 = dma.hbm_to_vmem [thread:$0]  %s80, 128, %s82, [#allocation3]
        $region16: #{tpu_custom_call.1} parent=11 // pred_fallthru
          _
      $region12: #{tpu_custom_call.1} parent=5 // pred_fallthru
        _
      %p85 = scmp.lt.s32.totalorder %s11, 2
      // Predicated region
      $region17: #{tpu_custom_call.1} parent=5 // pred_check
        %p86 = pneg %p85
      $region18: #{tpu_custom_call.1} parent=5 // pred_check_branch
        %88 = sbr.rel (%p86) target = $region20
      $region19: #{tpu_custom_call.1} parent=5 // pred_region
        _
      $region20: #{tpu_custom_call.1} parent=5 // pred_fallthru
        _
      %p89 = scmp.le.s32.totalorder 1, %s11
      %p90 = scmp.lt.s32.totalorder %s11, 3
      %p91 = pnand %p89, %p90
      %p92 = pneg %p91
      // Predicated region
      $region21: #{tpu_custom_call.1} parent=5 // pred_check
        _
      $region22: #{tpu_custom_call.1} parent=5 // pred_check_branch
        %94 = sbr.rel (%p91) target = $region24
      $region23: #{tpu_custom_call.1} parent=5 // pred_region
        %s95 = ssub.s32 %s11, 1
        // Predicated region
        $region25: #{tpu_custom_call.1} parent=23 // pred_check
          %p96 = pneg %p32
        $region26: #{tpu_custom_call.1} parent=23 // pred_check_branch
          %98 = sbr.rel (%p96) target = $region28
        $region27: #{tpu_custom_call.1} parent=23 // pred_region
          %100 = dma.done [#allocation3], 128
        $region28: #{tpu_custom_call.1} parent=23 // pred_fallthru
          _
        %p101 = pneg %p32
        %p102 = pneg %p29
        %p103 = pneg %p58
        %p104 = pneg %p55
        %s105 = sand.u32 %s45, 1
        %s106 = scalar_lea.sflag [#allocation4], %s105
        %s107 = sand.u32 %s45, 1
        %s108 = smul.addr %s107, 8
        %s109 = scalar_lea.vmem [#allocation5], %s108
        %v110 = vld [vmem:[#allocation2] sm:$0xff]
        %111 = vst [vmem:[%s109] sm:$0xff] %v110
        %s112 = sand.u32 %s45, 1
        %s113 = scalar_lea.sflag [#allocation4], %s112
        %s114 = sand.u32 %s45, 1
        %s115 = smul.addr %s114, 8
        %s116 = scalar_lea.vmem [#allocation5], %s115
        // Predicated region
        $region29: #{tpu_custom_call.1} parent=23 // pred_check
          %p117 = pneg %p55
        $region30: #{tpu_custom_call.1} parent=23 // pred_check_branch
          %119 = sbr.rel (%p117) target = $region32
        $region31: #{tpu_custom_call.1} parent=23 // pred_region
          %121 = vsyncadd %s113, 0
          %s122 = smul.addr %s16, 8
          %s123 = scalar_lea.hbm %s1, %s122
          %s125 = sshll.u32 %s116, 4
          %s126 = int_to_ptr.vmem [resolvable:$true] %s125
          %s127 = sshll.u32 %s123, 4
          %s128 = int_to_ptr.hbm [resolvable:$true] %s127
          %130 = dma.vmem_to_hbm [thread:$0]  %s126, 128, %s128, %s113
        $region32: #{tpu_custom_call.1} parent=23 // pred_fallthru
          _
      $region24: #{tpu_custom_call.1} parent=5 // pred_fallthru
        _
      %p131 = scmp.le.s32.totalorder 2, %s11
      // Predicated region
      $region33: #{tpu_custom_call.1} parent=5 // pred_check
        %p132 = pneg %p131
      $region34: #{tpu_custom_call.1} parent=5 // pred_check_branch
        %134 = sbr.rel (%p132) target = $region36
      $region35: #{tpu_custom_call.1} parent=5 // pred_region
        %s135 = ssub.s32 %s11, 2
        // Predicated region
        $region37: #{tpu_custom_call.1} parent=35 // pred_check
          %p136 = pneg %p61
        $region38: #{tpu_custom_call.1} parent=35 // pred_check_branch
          %138 = sbr.rel (%p136) target = $region40
        $region39: #{tpu_custom_call.1} parent=35 // pred_region
          %s139 = sand.u32 %s46, 1
          %s140 = scalar_lea.sflag [#allocation4], %s139
          %s141 = sand.u32 %s46, 1
          %s142 = smul.addr %s141, 8
          %s143 = scalar_lea.vmem [#allocation5], %s142
          %145 = dma.done %s140, 128
        $region40: #{tpu_custom_call.1} parent=35 // pred_fallthru
          _
      $region36: #{tpu_custom_call.1} parent=5 // pred_fallthru
        _
    $region6: #{tpu_custom_call.1} parent=1 // loop_footer
      %s15 = sadd.s32 1, %s11
    $region7: #{tpu_custom_call.1} parent=1 // loop_footer_branch
      %10 = sbr.rel target = $region3
    $region8: #{tpu_custom_call.1} parent=1 // loop_exit
      _
    %146 = vsyncpa [#allocation3], 1
    %s147 = scalar_lea.sflag [#allocation3], 1
    %148 = vsyncpa %s147, 1
    %149 = vsyncpa [#allocation4], 1
    %s150 = scalar_lea.sflag [#allocation4], 1
    %151 = vsyncpa %s150, 1

// kernel: tpu_custom_call.1
$region0: #{tpu_custom_call.1}
  #allocation0 [shape = 'u32[]', space=smem, size = 0x4, offset = 0x4, fixed_abs, tag = 'smem constant byte address 0x4 - core index']
  #allocation1 [shape = 'u32[72,128]{1,0:T(1,128)}', space=vmem, size = 0x9000, scoped, tag = 'internal scratch']
  %s0 = inlined_call_operand.vmem [shape: f32[2,8,32], index: 0, kind: input, shape index: {}]
  %s1 = inlined_call_operand.vmem [shape: f32[1,32], index: 1, kind: input, shape index: {}]
  %s2 = inlined_call_operand.vmem [shape: f32[1,32], index: 2, kind: input, shape index: {}]
  %s3 = inlined_call_operand.hbm [shape: bf16[32,160], index: 3, kind: input, shape index: {}]
  %s4 = inlined_call_operand.vmem [shape: f32[8,4], index: 4, kind: input, shape index: {}]
  %s5 = inlined_call_operand.vmem [shape: f32[8,4], index: 5, kind: input, shape index: {}]
  %s6 = inlined_call_operand.hbm [shape: bf16[2,8,64], index: 6, kind: output, shape index: {0}]
  %s7 = inlined_call_operand.hbm [shape: bf16[2,8,64], index: 7, kind: output, shape index: {1}]
  %s8 = inlined_call_operand.hbm [shape: bf16[2,8,32], index: 8, kind: output, shape index: {2}]
  %9 = xla_tuple %s6, %s7, %s8
  %s10 = sld [smem:[#allocation0]]
  $region54: #{tpu_custom_call.1} parent=0
    _
  %s12 = ssub.s32 1, %s10
  %s13 = scalar_select 0, %s12, %s10
  $region1: #{tpu_custom_call.1} parent=0
    #allocation2 [shape = 'u8[16384]{0}', space=vmem, size = 0x4000, scoped, tag = 'input window, operand 3, single buffered']
    #allocation3 [shape = 's32[1]{0}', space=sflag, size = 0x4, scoped, tag = 'scoped memory for tpu_custom_call.1']
    #allocation4 [shape = 's32[1]{0}', space=sflag, size = 0x4, scoped, tag = 'scoped memory for tpu_custom_call.1']
    #allocation5 [shape = 'u8[4096]{0}', space=vmem, size = 0x1000, scoped, tag = 'output window, operand 0, single buffered']
    #allocation6 [shape = 'u8[4096]{0}', space=vmem, size = 0x1000, scoped, tag = 'output window, operand 1, single buffered']
    #allocation7 [shape = 's32[1]{0}', space=sflag, size = 0x4, scoped, tag = 'scoped memory for tpu_custom_call.1']
    #allocation8 [shape = 'u8[4096]{0}', space=vmem, size = 0x1000, scoped, tag = 'output window, operand 2, single buffered']
    %14 = vsyncpa [#allocation3], 0
    %15 = vsyncpa [#allocation4], 0
    %16 = vsyncpa [#allocation7], 0
    // Predicated region
    $region2: #{tpu_custom_call.1} parent=1 // pred_check
      _
    $region3: #{tpu_custom_call.1} parent=1 // pred_check_branch
      %18 = sbr.rel (0) target = $region5
    $region4: #{tpu_custom_call.1} parent=1 // pred_region
      _
    $region5: #{tpu_custom_call.1} parent=1 // pred_fallthru
      _
    // Predicated region
    $region6: #{tpu_custom_call.1} parent=1 // pred_check
      _
    $region7: #{tpu_custom_call.1} parent=1 // pred_check_branch
      %20 = sbr.rel (0) target = $region9
    $region8: #{tpu_custom_call.1} parent=1 // pred_region
      _
    $region9: #{tpu_custom_call.1} parent=1 // pred_fallthru
      _
    // Predicated region
    $region10: #{tpu_custom_call.1} parent=1 // pred_check
      _
    $region11: #{tpu_custom_call.1} parent=1 // pred_check_branch
      %22 = sbr.rel (0) target = $region13
    $region12: #{tpu_custom_call.1} parent=1 // pred_region
      _
    $region13: #{tpu_custom_call.1} parent=1 // pred_fallthru
      _
    // Predicated region
    $region14: #{tpu_custom_call.1} parent=1 // pred_check
      _
    $region15: #{tpu_custom_call.1} parent=1 // pred_check_branch
      %24 = sbr.rel (0) target = $region17
    $region16: #{tpu_custom_call.1} parent=1 // pred_region
      %26 = vsyncadd [#allocation3], 0
      %s27 = sshll.u32 %s3, 4
      %s28 = int_to_ptr.hbm [resolvable:$true] %s27
      %s29 = sshll.u32 [#allocation2], 4
      %s30 = int_to_ptr.vmem [resolvable:$true] %s29
      %35 = dma.hbm_to_vmem [thread:$0]  %s28, 512, %s30, [#allocation3], 128, 128, 8
    $region17: #{tpu_custom_call.1} parent=1 // pred_fallthru
      _
    // Predicated region
    $region18: #{tpu_custom_call.1} parent=1 // pred_check
      _
    $region19: #{tpu_custom_call.1} parent=1 // pred_check_branch
      %37 = sbr.rel (0) target = $region21
    $region20: #{tpu_custom_call.1} parent=1 // pred_region
      _
    $region21: #{tpu_custom_call.1} parent=1 // pred_fallthru
      _
    // Predicated region
    $region22: #{tpu_custom_call.1} parent=1 // pred_check
      _
    $region23: #{tpu_custom_call.1} parent=1 // pred_check_branch
      %39 = sbr.rel (0) target = $region25
    $region24: #{tpu_custom_call.1} parent=1 // pred_region
      _
    $region25: #{tpu_custom_call.1} parent=1 // pred_fallthru
      _
    // Predicated region
    $region26: #{tpu_custom_call.1} parent=1 // pred_check
      _
    $region27: #{tpu_custom_call.1} parent=1 // pred_check_branch
      %41 = sbr.rel (0) target = $region29
    $region28: #{tpu_custom_call.1} parent=1 // pred_region
      %43 = dma.done [#allocation3], 512
    $region29: #{tpu_custom_call.1} parent=1 // pred_fallthru
      _
    %v45 = vld [vmem:[%s0] sm:$0xff]
    %v46 = vld [vmem:[%s0 + $0x8] sm:$0xff]
    %v47 = vld [vmem:[%s1] sm:$0x1]
    %v48 = vld [vmem:[%s2] sm:$0x1]
    %vm49 = vcmask 261120
    %v50 = vsel %vm49, %v45, 0.0
    %51 = vadd.xlane.f32.xlu0 %v50
    %v52 = vpop.xlane.xlu0 %51
    %v53 = vsel %vm49, %v46, 0.0
    %54 = vadd.xlane.f32.xlu0 %v53
    %v55 = vpop.xlane.xlu0 %54
    %v56 = vrcp.pop 32.0
    %v57 = vmul.f32 32.0, %v56
    %v58 = vsub.f32 1.0, %v57
    %v59 = vmul.f32 %v56, %v58
    %v60 = vadd.f32 %v56, %v59
    %vm61 = vweird.f32 %v56
    %v62 = vsel %vm61, %v56, %v60
    %v63 = vmul.f32 %v52, %v62
    %v64 = vmul.f32 %v55, %v62
    %v65 = vsub.f32 %v45, %v63
    %v66 = vsub.f32 %v46, %v64
    %v67 = vmul.f32 %v65, %v65
    %v68 = vmul.f32 %v66, %v66
    %v69 = vsel %vm49, %v67, 0.0
    %70 = vadd.xlane.f32.xlu0 %v69
    %v71 = vpop.xlane.xlu0 %70
    %v72 = vsel %vm49, %v68, 0.0
    %73 = vadd.xlane.f32.xlu0 %v72
    %v74 = vpop.xlane.xlu0 %73
    %v75 = vmul.f32 %v71, %v62
    %v76 = vmul.f32 %v74, %v62
    %v77 = vadd.f32 %v75, 1e-05
    %v78 = vadd.f32 %v76, 1e-05
    %v79 = vrsqrt.pop %v77
    %v80 = vmul.f32 %v79, %v77
    %v81 = vmul.f32 %v80, %v79
    %v82 = vmul.f32 0.5, %v81
    %v83 = vsub.f32 1.5, %v82
    %v84 = vmul.f32 %v79, %v83
    %vm85 = vweird.f32 %v77
    %vm86 = vweird.f32 %v79
    %vm87 = vmor %vm85, %vm86
    %v88 = vsel %vm87, %v79, %v84
    %v89 = vrsqrt.pop %v78
    %v90 = vmul.f32 %v89, %v78
    %v91 = vmul.f32 %v90, %v89
    %v92 = vmul.f32 0.5, %v91
    %v93 = vsub.f32 1.5, %v92
    %v94 = vmul.f32 %v89, %v93
    %vm95 = vweird.f32 %v78
    %vm96 = vweird.f32 %v89
    %vm97 = vmor %vm95, %vm96
    %v98 = vsel %vm97, %v89, %v94
    %v99 = vmul.f32 %v65, %v88
    %v100 = vmul.f32 %v66, %v98
    %v102 = vperm.slane %v47, 0
    %v104 = vmul.f32 %v99, %v102
    %v105 = vmul.f32 %v100, %v102
    %v107 = vperm.slane %v48, 0
    %v109 = vadd.f32 %v104, %v107
    %v110 = vadd.f32 %v105, %v107
    %v111 = vpack.c.bf16 %v109, %v109
    %v112 = vpack.c.bf16 %v110, %v110
    %v113 = vld [vmem:[#allocation2] sm:$0xff]
    %v114 = vld [vmem:[#allocation2 + $0x8] sm:$0xff]
    %v115 = vld [vmem:[#allocation2 + $0x10] sm:$0xff]
    %v116 = vld [vmem:[#allocation2 + $0x18] sm:$0xff]
    %v119 = vunpack.c.l.b16 %v111
    %v120 = vunpack.c.l.b16 %v112
    %v121 = vpack.c.b16 %v120, %v119
    %v126 = vunpack.c.l.b16 %v113
    %v127 = vunpack.c.h.b16 %v113
    %v128 = vunpack.c.l.b16 %v114
    %v129 = vunpack.c.h.b16 %v114
    %v130 = vunpack.c.l.b16 %v115
    %v131 = vunpack.c.h.b16 %v115
    %v132 = vunpack.c.l.b16 %v116
    %v133 = vunpack.c.h.b16 %v116
    %v134 = vpack.c.b16 %v128, %v126
    %v135 = vpack.c.b16 %v129, %v127
    %v136 = vpack.c.b16 %v132, %v130
    %v137 = vpack.c.b16 %v133, %v131
    %v143 = vsel %vm49, %v121, 0
    %145 = vmatpush.bf16.msra.mxu0 0
    %146 = vmatpush.bf16.msra.mxu0 0
    %147 = vmatpush.bf16.msra.mxu0 0
    %148 = vmatpush.bf16.msra.mxu0 0
    %149 = vmatpush.bf16.msra.mxu0 0
    %150 = vmatpush.bf16.msra.mxu0 0
    %151 = vmatpush.bf16.msra.mxu0 %v136
    %152 = vmatpush.bf16.msra.mxu0 %v134
    %153 = vmatmul.bf16.gmra.mxu0 %v143
    %v154 = vpop.f32.mrf.mxu0
    %v155 = vadd.f32 0.0, %v154
    %v156 = vpop.f32.mrf.mxu0
    %v157 = vadd.f32 0.0, %v156
    %158 = vdwg.mxu0
    %159 = vmatpush.bf16.msra.mxu0 0
    %160 = vmatpush.bf16.msra.mxu0 0
    %161 = vmatpush.bf16.msra.mxu0 0
    %162 = vmatpush.bf16.msra.mxu0 0
    %163 = vmatpush.bf16.msra.mxu0 0
    %164 = vmatpush.bf16.msra.mxu0 0
    %165 = vmatpush.bf16.msra.mxu0 %v137
    %166 = vmatpush.bf16.msra.mxu0 %v135
    %167 = vmatmul.bf16.gmra.mxu0 %v143
    %v168 = vpop.f32.mrf.mxu0
    %v169 = vadd.f32 0.0, %v168
    %v170 = vpop.f32.mrf.mxu0
    %v171 = vadd.f32 0.0, %v170
    %172 = vdwg.mxu0
    %v173 = vld [vmem:[%s4] sm:$0xff]
    %v174 = vld [vmem:[%s5] sm:$0xff]
    %v175 = vmul.f32 %v155, %v173
    %v176 = vmul.f32 %v157, %v173
    %178 = vrot.lane.b32.xlu0 %v174, 4
    %v179 = vpop.permute.xlu0 %178
    %v181 = vmul.f32 %v155, %v179
    %v182 = vmul.f32 %v157, %v179
    %185 = vrot.lane.b32.xlu0 %v181, 124
    %v186 = vpop.permute.xlu0 %185
    %187 = vrot.lane.b32.xlu0 %v182, 124
    %v188 = vpop.permute.xlu0 %187
    %v191 = vsub.f32 %v175, %v186
    %v192 = vsub.f32 %v176, %v188
    %v193 = vmul.f32 %v155, %v174
    %v194 = vmul.f32 %v157, %v174
    %196 = vrot.lane.b32.xlu0 %v173, 4
    %v197 = vpop.permute.xlu0 %196
    %v199 = vmul.f32 %v155, %v197
    %v200 = vmul.f32 %v157, %v197
    %203 = vrot.lane.b32.xlu0 %v199, 124
    %v204 = vpop.permute.xlu0 %203
    %205 = vrot.lane.b32.xlu0 %v200, 124
    %v206 = vpop.permute.xlu0 %205
    %v209 = vadd.f32 %v193, %v204
    %v210 = vadd.f32 %v194, %v206
    %213 = vrot.lane.b32.xlu0 %v209, 4
    %v214 = vpop.permute.xlu0 %213
    %215 = vrot.lane.b32.xlu0 %v210, 4
    %v216 = vpop.permute.xlu0 %215
    %vm219 = vcmask 31744
    %v220 = vsel %vm219, %v191, %v214
    %v221 = vsel %vm219, %v192, %v216
    %222 = vrot.lane.b32.xlu0 %v173, 8
    %v223 = vpop.permute.xlu0 %222
    %v225 = vmul.f32 %v155, %v223
    %v226 = vmul.f32 %v157, %v223
    %227 = vrot.lane.b32.xlu0 %v174, 12
    %v228 = vpop.permute.xlu0 %227
    %v230 = vmul.f32 %v155, %v228
    %v231 = vmul.f32 %v157, %v228
    %234 = vrot.lane.b32.xlu0 %v230, 124
    %v235 = vpop.permute.xlu0 %234
    %236 = vrot.lane.b32.xlu0 %v231, 124
    %v237 = vpop.permute.xlu0 %236
    %v240 = vsub.f32 %v225, %v235
    %v241 = vsub.f32 %v226, %v237
    %242 = vrot.lane.b32.xlu0 %v174, 8
    %v243 = vpop.permute.xlu0 %242
    %v245 = vmul.f32 %v155, %v243
    %v246 = vmul.f32 %v157, %v243
    %247 = vrot.lane.b32.xlu0 %v173, 12
    %v248 = vpop.permute.xlu0 %247
    %v250 = vmul.f32 %v155, %v248
    %v251 = vmul.f32 %v157, %v248
    %254 = vrot.lane.b32.xlu0 %v250, 124
    %v255 = vpop.permute.xlu0 %254
    %256 = vrot.lane.b32.xlu0 %v251, 124
    %v257 = vpop.permute.xlu0 %256
    %v260 = vadd.f32 %v245, %v255
    %v261 = vadd.f32 %v246, %v257
    %264 = vrot.lane.b32.xlu0 %v240, 120
    %v265 = vpop.permute.xlu0 %264
    %266 = vrot.lane.b32.xlu0 %v241, 120
    %v267 = vpop.permute.xlu0 %266
    %272 = vrot.lane.b32.xlu0 %v260, 124
    %v273 = vpop.permute.xlu0 %272
    %274 = vrot.lane.b32.xlu0 %v261, 124
    %v275 = vpop.permute.xlu0 %274
    %v278 = vsel %vm219, %v265, %v273
    %v279 = vsel %vm219, %v267, %v275
    %280 = vrot.lane.b32.xlu0 %v173, 16
    %v281 = vpop.permute.xlu0 %280
    %v283 = vmul.f32 %v155, %v281
    %v284 = vmul.f32 %v157, %v281
    %285 = vrot.lane.b32.xlu0 %v174, 20
    %v286 = vpop.permute.xlu0 %285
    %v288 = vmul.f32 %v155, %v286
    %v289 = vmul.f32 %v157, %v286
    %292 = vrot.lane.b32.xlu0 %v288, 124
    %v293 = vpop.permute.xlu0 %292
    %294 = vrot.lane.b32.xlu0 %v289, 124
    %v295 = vpop.permute.xlu0 %294
    %v298 = vsub.f32 %v283, %v293
    %v299 = vsub.f32 %v284, %v295
    %300 = vrot.lane.b32.xlu0 %v174, 16
    %v301 = vpop.permute.xlu0 %300
    %v303 = vmul.f32 %v155, %v301
    %v304 = vmul.f32 %v157, %v301
    %305 = vrot.lane.b32.xlu0 %v173, 20
    %v306 = vpop.permute.xlu0 %305
    %v308 = vmul.f32 %v155, %v306
    %v309 = vmul.f32 %v157, %v306
    %312 = vrot.lane.b32.xlu0 %v308, 124
    %v313 = vpop.permute.xlu0 %312
    %314 = vrot.lane.b32.xlu0 %v309, 124
    %v315 = vpop.permute.xlu0 %314
    %v318 = vadd.f32 %v303, %v313
    %v319 = vadd.f32 %v304, %v315
    %322 = vrot.lane.b32.xlu0 %v298, 112
    %v323 = vpop.permute.xlu0 %322
    %324 = vrot.lane.b32.xlu0 %v299, 112
    %v325 = vpop.permute.xlu0 %324
    %330 = vrot.lane.b32.xlu0 %v318, 116
    %v331 = vpop.permute.xlu0 %330
    %332 = vrot.lane.b32.xlu0 %v319, 116
    %v333 = vpop.permute.xlu0 %332
    %v336 = vsel %vm219, %v323, %v331
    %v337 = vsel %vm219, %v325, %v333
    %338 = vrot.lane.b32.xlu0 %v173, 24
    %v339 = vpop.permute.xlu0 %338
    %v341 = vmul.f32 %v155, %v339
    %v342 = vmul.f32 %v157, %v339
    %343 = vrot.lane.b32.xlu0 %v174, 28
    %v344 = vpop.permute.xlu0 %343
    %v346 = vmul.f32 %v155, %v344
    %v347 = vmul.f32 %v157, %v344
    %350 = vrot.lane.b32.xlu0 %v346, 124
    %v351 = vpop.permute.xlu0 %350
    %352 = vrot.lane.b32.xlu0 %v347, 124
    %v353 = vpop.permute.xlu0 %352
    %v356 = vsub.f32 %v341, %v351
    %v357 = vsub.f32 %v342, %v353
    %358 = vrot.lane.b32.xlu0 %v174, 24
    %v359 = vpop.permute.xlu0 %358
    %v361 = vmul.f32 %v155, %v359
    %v362 = vmul.f32 %v157, %v359
    %363 = vrot.lane.b32.xlu0 %v173, 28
    %v364 = vpop.permute.xlu0 %363
    %v366 = vmul.f32 %v155, %v364
    %v367 = vmul.f32 %v157, %v364
    %370 = vrot.lane.b32.xlu0 %v366, 124
    %v371 = vpop.permute.xlu0 %370
    %372 = vrot.lane.b32.xlu0 %v367, 124
    %v373 = vpop.permute.xlu0 %372
    %v376 = vadd.f32 %v361, %v371
    %v377 = vadd.f32 %v362, %v373
    %380 = vrot.lane.b32.xlu0 %v356, 104
    %v381 = vpop.permute.xlu0 %380
    %382 = vrot.lane.b32.xlu0 %v357, 104
    %v383 = vpop.permute.xlu0 %382
    %388 = vrot.lane.b32.xlu0 %v376, 108
    %v389 = vpop.permute.xlu0 %388
    %390 = vrot.lane.b32.xlu0 %v377, 108
    %v391 = vpop.permute.xlu0 %390
    %v394 = vsel %vm219, %v381, %v389
    %v395 = vsel %vm219, %v383, %v391
    %396 = vrot.lane.b32.xlu0 %v173, 32
    %v397 = vpop.permute.xlu0 %396
    %v399 = vmul.f32 %v155, %v397
    %v400 = vmul.f32 %v157, %v397
    %401 = vrot.lane.b32.xlu0 %v174, 36
    %v402 = vpop.permute.xlu0 %401
    %v404 = vmul.f32 %v155, %v402
    %v405 = vmul.f32 %v157, %v402
    %408 = vrot.lane.b32.xlu0 %v404, 124
    %v409 = vpop.permute.xlu0 %408
    %410 = vrot.lane.b32.xlu0 %v405, 124
    %v411 = vpop.permute.xlu0 %410
    %v414 = vsub.f32 %v399, %v409
    %v415 = vsub.f32 %v400, %v411
    %416 = vrot.lane.b32.xlu0 %v174, 32
    %v417 = vpop.permute.xlu0 %416
    %v419 = vmul.f32 %v155, %v417
    %v420 = vmul.f32 %v157, %v417
    %421 = vrot.lane.b32.xlu0 %v173, 36
    %v422 = vpop.permute.xlu0 %421
    %v424 = vmul.f32 %v155, %v422
    %v425 = vmul.f32 %v157, %v422
    %428 = vrot.lane.b32.xlu0 %v424, 124
    %v429 = vpop.permute.xlu0 %428
    %430 = vrot.lane.b32.xlu0 %v425, 124
    %v431 = vpop.permute.xlu0 %430
    %v434 = vadd.f32 %v419, %v429
    %v435 = vadd.f32 %v420, %v431
    %438 = vrot.lane.b32.xlu0 %v414, 96
    %v439 = vpop.permute.xlu0 %438
    %440 = vrot.lane.b32.xlu0 %v415, 96
    %v441 = vpop.permute.xlu0 %440
    %446 = vrot.lane.b32.xlu0 %v434, 100
    %v447 = vpop.permute.xlu0 %446
    %448 = vrot.lane.b32.xlu0 %v435, 100
    %v449 = vpop.permute.xlu0 %448
    %v452 = vsel %vm219, %v439, %v447
    %v453 = vsel %vm219, %v441, %v449
    %454 = vrot.lane.b32.xlu0 %v173, 40
    %v455 = vpop.permute.xlu0 %454
    %v457 = vmul.f32 %v155, %v455
    %v458 = vmul.f32 %v157, %v455
    %459 = vrot.lane.b32.xlu0 %v174, 44
    %v460 = vpop.permute.xlu0 %459
    %v462 = vmul.f32 %v155, %v460
    %v463 = vmul.f32 %v157, %v460
    %466 = vrot.lane.b32.xlu0 %v462, 124
    %v467 = vpop.permute.xlu0 %466
    %468 = vrot.lane.b32.xlu0 %v463, 124
    %v469 = vpop.permute.xlu0 %468
    %v472 = vsub.f32 %v457, %v467
    %v473 = vsub.f32 %v458, %v469
    %474 = vrot.lane.b32.xlu0 %v174, 40
    %v475 = vpop.permute.xlu0 %474
    %v477 = vmul.f32 %v155, %v475
    %v478 = vmul.f32 %v157, %v475
    %479 = vrot.lane.b32.xlu0 %v173, 44
    %v480 = vpop.permute.xlu0 %479
    %v482 = vmul.f32 %v155, %v480
    %v483 = vmul.f32 %v157, %v480
    %486 = vrot.lane.b32.xlu0 %v482, 124
    %v487 = vpop.permute.xlu0 %486
    %488 = vrot.lane.b32.xlu0 %v483, 124
    %v489 = vpop.permute.xlu0 %488
    %v492 = vadd.f32 %v477, %v487
    %v493 = vadd.f32 %v478, %v489
    %496 = vrot.lane.b32.xlu0 %v472, 88
    %v497 = vpop.permute.xlu0 %496
    %498 = vrot.lane.b32.xlu0 %v473, 88
    %v499 = vpop.permute.xlu0 %498
    %504 = vrot.lane.b32.xlu0 %v492, 92
    %v505 = vpop.permute.xlu0 %504
    %506 = vrot.lane.b32.xlu0 %v493, 92
    %v507 = vpop.permute.xlu0 %506
    %v510 = vsel %vm219, %v497, %v505
    %v511 = vsel %vm219, %v499, %v507
    %512 = vrot.lane.b32.xlu0 %v173, 48
    %v513 = vpop.permute.xlu0 %512
    %v515 = vmul.f32 %v155, %v513
    %v516 = vmul.f32 %v157, %v513
    %517 = vrot.lane.b32.xlu0 %v174, 52
    %v518 = vpop.permute.xlu0 %517
    %v520 = vmul.f32 %v155, %v518
    %v521 = vmul.f32 %v157, %v518
    %524 = vrot.lane.b32.xlu0 %v520, 124
    %v525 = vpop.permute.xlu0 %524
    %526 = vrot.lane.b32.xlu0 %v521, 124
    %v527 = vpop.permute.xlu0 %526
    %v530 = vsub.f32 %v515, %v525
    %v531 = vsub.f32 %v516, %v527
    %532 = vrot.lane.b32.xlu0 %v174, 48
    %v533 = vpop.permute.xlu0 %532
    %v535 = vmul.f32 %v155, %v533
    %v536 = vmul.f32 %v157, %v533
    %537 = vrot.lane.b32.xlu0 %v173, 52
    %v538 = vpop.permute.xlu0 %537
    %v540 = vmul.f32 %v155, %v538
    %v541 = vmul.f32 %v157, %v538
    %544 = vrot.lane.b32.xlu0 %v540, 124
    %v545 = vpop.permute.xlu0 %544
    %546 = vrot.lane.b32.xlu0 %v541, 124
    %v547 = vpop.permute.xlu0 %546
    %v550 = vadd.f32 %v535, %v545
    %v551 = vadd.f32 %v536, %v547
    %554 = vrot.lane.b32.xlu0 %v530, 80
    %v555 = vpop.permute.xlu0 %554
    %556 = vrot.lane.b32.xlu0 %v531, 80
    %v557 = vpop.permute.xlu0 %556
    %562 = vrot.lane.b32.xlu0 %v550, 84
    %v563 = vpop.permute.xlu0 %562
    %564 = vrot.lane.b32.xlu0 %v551, 84
    %v565 = vpop.permute.xlu0 %564
    %v568 = vsel %vm219, %v555, %v563
    %v569 = vsel %vm219, %v557, %v565
    %570 = vrot.lane.b32.xlu0 %v173, 56
    %v571 = vpop.permute.xlu0 %570
    %v573 = vmul.f32 %v155, %v571
    %v574 = vmul.f32 %v157, %v571
    %575 = vrot.lane.b32.xlu0 %v174, 60
    %v576 = vpop.permute.xlu0 %575
    %v578 = vmul.f32 %v155, %v576
    %v579 = vmul.f32 %v157, %v576
    %582 = vrot.lane.b32.xlu0 %v578, 124
    %v583 = vpop.permute.xlu0 %582
    %584 = vrot.lane.b32.xlu0 %v579, 124
    %v585 = vpop.permute.xlu0 %584
    %v588 = vsub.f32 %v573, %v583
    %v589 = vsub.f32 %v574, %v585
    %590 = vrot.lane.b32.xlu0 %v174, 56
    %v591 = vpop.permute.xlu0 %590
    %v593 = vmul.f32 %v155, %v591
    %v594 = vmul.f32 %v157, %v591
    %595 = vrot.lane.b32.xlu0 %v173, 60
    %v596 = vpop.permute.xlu0 %595
    %v598 = vmul.f32 %v155, %v596
    %v599 = vmul.f32 %v157, %v596
    %602 = vrot.lane.b32.xlu0 %v598, 124
    %v603 = vpop.permute.xlu0 %602
    %604 = vrot.lane.b32.xlu0 %v599, 124
    %v605 = vpop.permute.xlu0 %604
    %v608 = vadd.f32 %v593, %v603
    %v609 = vadd.f32 %v594, %v605
    %612 = vrot.lane.b32.xlu0 %v588, 72
    %v613 = vpop.permute.xlu0 %612
    %614 = vrot.lane.b32.xlu0 %v589, 72
    %v615 = vpop.permute.xlu0 %614
    %620 = vrot.lane.b32.xlu0 %v608, 76
    %v621 = vpop.permute.xlu0 %620
    %622 = vrot.lane.b32.xlu0 %v609, 76
    %v623 = vpop.permute.xlu0 %622
    %v626 = vsel %vm219, %v613, %v621
    %v627 = vsel %vm219, %v615, %v623
    %630 = vrot.lane.b32.xlu0 %v278, 8
    %v631 = vpop.permute.xlu0 %630
    %632 = vrot.lane.b32.xlu0 %v279, 8
    %v633 = vpop.permute.xlu0 %632
    %638 = vrot.lane.b32.xlu0 %v336, 16
    %v639 = vpop.permute.xlu0 %638
    %640 = vrot.lane.b32.xlu0 %v337, 16
    %v641 = vpop.permute.xlu0 %640
    %646 = vrot.lane.b32.xlu0 %v394, 24
    %v647 = vpop.permute.xlu0 %646
    %648 = vrot.lane.b32.xlu0 %v395, 24
    %v649 = vpop.permute.xlu0 %648
    %654 = vrot.lane.b32.xlu0 %v452, 32
    %v655 = vpop.permute.xlu0 %654
    %656 = vrot.lane.b32.xlu0 %v453, 32
    %v657 = vpop.permute.xlu0 %656
    %662 = vrot.lane.b32.xlu0 %v510, 40
    %v663 = vpop.permute.xlu0 %662
    %664 = vrot.lane.b32.xlu0 %v511, 40
    %v665 = vpop.permute.xlu0 %664
    %670 = vrot.lane.b32.xlu0 %v568, 48
    %v671 = vpop.permute.xlu0 %670
    %672 = vrot.lane.b32.xlu0 %v569, 48
    %v673 = vpop.permute.xlu0 %672
    %678 = vrot.lane.b32.xlu0 %v626, 56
    %v679 = vpop.permute.xlu0 %678
    %680 = vrot.lane.b32.xlu0 %v627, 56
    %v681 = vpop.permute.xlu0 %680
    %vm684 = vcmask 64512
    %v685 = vsel %vm684, %v220, %v631
    %v686 = vsel %vm684, %v221, %v633
    %vm687 = vcmask 130048
    %v688 = vsel %vm687, %v685, %v639
    %v689 = vsel %vm687, %v686, %v641
    %vm690 = vcmask 195584
    %v691 = vsel %vm690, %v688, %v647
    %v692 = vsel %vm690, %v689, %v649
    %v693 = vsel %vm49, %v691, %v655
    %v694 = vsel %vm49, %v692, %v657
    %vm695 = vcmask 326656
    %v696 = vsel %vm695, %v693, %v663
    %v697 = vsel %vm695, %v694, %v665
    %vm698 = vcmask 392192
    %v699 = vsel %vm698, %v696, %v671
    %v700 = vsel %vm698, %v697, %v673
    %vm701 = vcmask 457728
    %v702 = vsel %vm701, %v699, %v679
    %v703 = vsel %vm701, %v700, %v681
    %v704 = vpack.c.bf16 %v702, %v702
    %v705 = vpack.c.bf16 %v703, %v703
    %vm706 = vcmask 519168
    %707 = vst.msk [vmem:[#allocation5] sm:$0xf] %vm706, %v704
    %708 = vst.msk [vmem:[#allocation5 + $0x4] sm:$0xf] %vm706, %v705
    %709 = vrot.lane.b32.xlu0 %v173, 64
    %v710 = vpop.permute.xlu0 %709
    %v712 = vmul.f32 %v155, %v710
    %v713 = vmul.f32 %v157, %v710
    %714 = vrot.lane.b32.xlu0 %v174, 68
    %v715 = vpop.permute.xlu0 %714
    %v717 = vmul.f32 %v155, %v715
    %v718 = vmul.f32 %v157, %v715
    %721 = vrot.lane.b32.xlu0 %v717, 124
    %v722 = vpop.permute.xlu0 %721
    %723 = vrot.lane.b32.xlu0 %v718, 124
    %v724 = vpop.permute.xlu0 %723
    %v727 = vsub.f32 %v712, %v722
    %v728 = vsub.f32 %v713, %v724
    %729 = vrot.lane.b32.xlu0 %v174, 64
    %v730 = vpop.permute.xlu0 %729
    %v732 = vmul.f32 %v155, %v730
    %v733 = vmul.f32 %v157, %v730
    %734 = vrot.lane.b32.xlu0 %v173, 68
    %v735 = vpop.permute.xlu0 %734
    %v737 = vmul.f32 %v155, %v735
    %v738 = vmul.f32 %v157, %v735
    %741 = vrot.lane.b32.xlu0 %v737, 124
    %v742 = vpop.permute.xlu0 %741
    %743 = vrot.lane.b32.xlu0 %v738, 124
    %v744 = vpop.permute.xlu0 %743
    %v747 = vadd.f32 %v732, %v742
    %v748 = vadd.f32 %v733, %v744
    %751 = vrot.lane.b32.xlu0 %v727, 64
    %v752 = vpop.permute.xlu0 %751
    %753 = vrot.lane.b32.xlu0 %v728, 64
    %v754 = vpop.permute.xlu0 %753
    %759 = vrot.lane.b32.xlu0 %v747, 68
    %v760 = vpop.permute.xlu0 %759
    %761 = vrot.lane.b32.xlu0 %v748, 68
    %v762 = vpop.permute.xlu0 %761
    %v765 = vsel %vm219, %v752, %v760
    %v766 = vsel %vm219, %v754, %v762
    %767 = vrot.lane.b32.xlu0 %v173, 72
    %v768 = vpop.permute.xlu0 %767
    %v770 = vmul.f32 %v155, %v768
    %v771 = vmul.f32 %v157, %v768
    %772 = vrot.lane.b32.xlu0 %v174, 76
    %v773 = vpop.permute.xlu0 %772
    %v775 = vmul.f32 %v155, %v773
    %v776 = vmul.f32 %v157, %v773
    %779 = vrot.lane.b32.xlu0 %v775, 124
    %v780 = vpop.permute.xlu0 %779
    %781 = vrot.lane.b32.xlu0 %v776, 124
    %v782 = vpop.permute.xlu0 %781
    %v785 = vsub.f32 %v770, %v780
    %v786 = vsub.f32 %v771, %v782
    %787 = vrot.lane.b32.xlu0 %v174, 72
    %v788 = vpop.permute.xlu0 %787
    %v790 = vmul.f32 %v155, %v788
    %v791 = vmul.f32 %v157, %v788
    %792 = vrot.lane.b32.xlu0 %v173, 76
    %v793 = vpop.permute.xlu0 %792
    %v795 = vmul.f32 %v155, %v793
    %v796 = vmul.f32 %v157, %v793
    %799 = vrot.lane.b32.xlu0 %v795, 124
    %v800 = vpop.permute.xlu0 %799
    %801 = vrot.lane.b32.xlu0 %v796, 124
    %v802 = vpop.permute.xlu0 %801
    %v805 = vadd.f32 %v790, %v800
    %v806 = vadd.f32 %v791, %v802
    %809 = vrot.lane.b32.xlu0 %v785, 56
    %v810 = vpop.permute.xlu0 %809
    %811 = vrot.lane.b32.xlu0 %v786, 56
    %v812 = vpop.permute.xlu0 %811
    %817 = vrot.lane.b32.xlu0 %v805, 60
    %v818 = vpop.permute.xlu0 %817
    %819 = vrot.lane.b32.xlu0 %v806, 60
    %v820 = vpop.permute.xlu0 %819
    %v823 = vsel %vm219, %v810, %v818
    %v824 = vsel %vm219, %v812, %v820
    %825 = vrot.lane.b32.xlu0 %v173, 80
    %v826 = vpop.permute.xlu0 %825
    %v828 = vmul.f32 %v155, %v826
    %v829 = vmul.f32 %v157, %v826
    %830 = vrot.lane.b32.xlu0 %v174, 84
    %v831 = vpop.permute.xlu0 %830
    %v833 = vmul.f32 %v155, %v831
    %v834 = vmul.f32 %v157, %v831
    %837 = vrot.lane.b32.xlu0 %v833, 124
    %v838 = vpop.permute.xlu0 %837
    %839 = vrot.lane.b32.xlu0 %v834, 124
    %v840 = vpop.permute.xlu0 %839
    %v843 = vsub.f32 %v828, %v838
    %v844 = vsub.f32 %v829, %v840
    %845 = vrot.lane.b32.xlu0 %v174, 80
    %v846 = vpop.permute.xlu0 %845
    %v848 = vmul.f32 %v155, %v846
    %v849 = vmul.f32 %v157, %v846
    %850 = vrot.lane.b32.xlu0 %v173, 84
    %v851 = vpop.permute.xlu0 %850
    %v853 = vmul.f32 %v155, %v851
    %v854 = vmul.f32 %v157, %v851
    %857 = vrot.lane.b32.xlu0 %v853, 124
    %v858 = vpop.permute.xlu0 %857
    %859 = vrot.lane.b32.xlu0 %v854, 124
    %v860 = vpop.permute.xlu0 %859
    %v863 = vadd.f32 %v848, %v858
    %v864 = vadd.f32 %v849, %v860
    %867 = vrot.lane.b32.xlu0 %v843, 48
    %v868 = vpop.permute.xlu0 %867
    %869 = vrot.lane.b32.xlu0 %v844, 48
    %v870 = vpop.permute.xlu0 %869
    %875 = vrot.lane.b32.xlu0 %v863, 52
    %v876 = vpop.permute.xlu0 %875
    %877 = vrot.lane.b32.xlu0 %v864, 52
    %v878 = vpop.permute.xlu0 %877
    %v881 = vsel %vm219, %v868, %v876
    %v882 = vsel %vm219, %v870, %v878
    %883 = vrot.lane.b32.xlu0 %v173, 88
    %v884 = vpop.permute.xlu0 %883
    %v886 = vmul.f32 %v155, %v884
    %v887 = vmul.f32 %v157, %v884
    %888 = vrot.lane.b32.xlu0 %v174, 92
    %v889 = vpop.permute.xlu0 %888
    %v891 = vmul.f32 %v155, %v889
    %v892 = vmul.f32 %v157, %v889
    %895 = vrot.lane.b32.xlu0 %v891, 124
    %v896 = vpop.permute.xlu0 %895
    %897 = vrot.lane.b32.xlu0 %v892, 124
    %v898 = vpop.permute.xlu0 %897
    %v901 = vsub.f32 %v886, %v896
    %v902 = vsub.f32 %v887, %v898
    %903 = vrot.lane.b32.xlu0 %v174, 88
    %v904 = vpop.permute.xlu0 %903
    %v906 = vmul.f32 %v155, %v904
    %v907 = vmul.f32 %v157, %v904
    %908 = vrot.lane.b32.xlu0 %v173, 92
    %v909 = vpop.permute.xlu0 %908
    %v911 = vmul.f32 %v155, %v909
    %v912 = vmul.f32 %v157, %v909
    %915 = vrot.lane.b32.xlu0 %v911, 124
    %v916 = vpop.permute.xlu0 %915
    %917 = vrot.lane.b32.xlu0 %v912, 124
    %v918 = vpop.permute.xlu0 %917
    %v921 = vadd.f32 %v906, %v916
    %v922 = vadd.f32 %v907, %v918
    %925 = vrot.lane.b32.xlu0 %v901, 40
    %v926 = vpop.permute.xlu0 %925
    %927 = vrot.lane.b32.xlu0 %v902, 40
    %v928 = vpop.permute.xlu0 %927
    %933 = vrot.lane.b32.xlu0 %v921, 44
    %v934 = vpop.permute.xlu0 %933
    %935 = vrot.lane.b32.xlu0 %v922, 44
    %v936 = vpop.permute.xlu0 %935
    %v939 = vsel %vm219, %v926, %v934
    %v940 = vsel %vm219, %v928, %v936
    %941 = vrot.lane.b32.xlu0 %v173, 96
    %v942 = vpop.permute.xlu0 %941
    %v944 = vmul.f32 %v155, %v942
    %v945 = vmul.f32 %v157, %v942
    %946 = vrot.lane.b32.xlu0 %v174, 100
    %v947 = vpop.permute.xlu0 %946
    %v949 = vmul.f32 %v155, %v947
    %v950 = vmul.f32 %v157, %v947
    %953 = vrot.lane.b32.xlu0 %v949, 124
    %v954 = vpop.permute.xlu0 %953
    %955 = vrot.lane.b32.xlu0 %v950, 124
    %v956 = vpop.permute.xlu0 %955
    %v959 = vsub.f32 %v944, %v954
    %v960 = vsub.f32 %v945, %v956
    %961 = vrot.lane.b32.xlu0 %v174, 96
    %v962 = vpop.permute.xlu0 %961
    %v964 = vmul.f32 %v155, %v962
    %v965 = vmul.f32 %v157, %v962
    %966 = vrot.lane.b32.xlu0 %v173, 100
    %v967 = vpop.permute.xlu0 %966
    %v969 = vmul.f32 %v155, %v967
    %v970 = vmul.f32 %v157, %v967
    %973 = vrot.lane.b32.xlu0 %v969, 124
    %v974 = vpop.permute.xlu0 %973
    %975 = vrot.lane.b32.xlu0 %v970, 124
    %v976 = vpop.permute.xlu0 %975
    %v979 = vadd.f32 %v964, %v974
    %v980 = vadd.f32 %v965, %v976
    %983 = vrot.lane.b32.xlu0 %v959, 32
    %v984 = vpop.permute.xlu0 %983
    %985 = vrot.lane.b32.xlu0 %v960, 32
    %v986 = vpop.permute.xlu0 %985
    %991 = vrot.lane.b32.xlu0 %v979, 36
    %v992 = vpop.permute.xlu0 %991
    %993 = vrot.lane.b32.xlu0 %v980, 36
    %v994 = vpop.permute.xlu0 %993
    %v997 = vsel %vm219, %v984, %v992
    %v998 = vsel %vm219, %v986, %v994
    %999 = vrot.lane.b32.xlu0 %v173, 104
    %v1000 = vpop.permute.xlu0 %999
    %v1002 = vmul.f32 %v155, %v1000
    %v1003 = vmul.f32 %v157, %v1000
    %1004 = vrot.lane.b32.xlu0 %v174, 108
    %v1005 = vpop.permute.xlu0 %1004
    %v1007 = vmul.f32 %v155, %v1005
    %v1008 = vmul.f32 %v157, %v1005
    %1011 = vrot.lane.b32.xlu0 %v1007, 124
    %v1012 = vpop.permute.xlu0 %1011
    %1013 = vrot.lane.b32.xlu0 %v1008, 124
    %v1014 = vpop.permute.xlu0 %1013
    %v1017 = vsub.f32 %v1002, %v1012
    %v1018 = vsub.f32 %v1003, %v1014
    %1019 = vrot.lane.b32.xlu0 %v174, 104
    %v1020 = vpop.permute.xlu0 %1019
    %v1022 = vmul.f32 %v155, %v1020
    %v1023 = vmul.f32 %v157, %v1020
    %1024 = vrot.lane.b32.xlu0 %v173, 108
    %v1025 = vpop.permute.xlu0 %1024
    %v1027 = vmul.f32 %v155, %v1025
    %v1028 = vmul.f32 %v157, %v1025
    %1031 = vrot.lane.b32.xlu0 %v1027, 124
    %v1032 = vpop.permute.xlu0 %1031
    %1033 = vrot.lane.b32.xlu0 %v1028, 124
    %v1034 = vpop.permute.xlu0 %1033
    %v1037 = vadd.f32 %v1022, %v1032
    %v1038 = vadd.f32 %v1023, %v1034
    %1041 = vrot.lane.b32.xlu0 %v1017, 24
    %v1042 = vpop.permute.xlu0 %1041
    %1043 = vrot.lane.b32.xlu0 %v1018, 24
    %v1044 = vpop.permute.xlu0 %1043
    %1049 = vrot.lane.b32.xlu0 %v1037, 28
    %v1050 = vpop.permute.xlu0 %1049
    %1051 = vrot.lane.b32.xlu0 %v1038, 28
    %v1052 = vpop.permute.xlu0 %1051
    %v1055 = vsel %vm219, %v1042, %v1050
    %v1056 = vsel %vm219, %v1044, %v1052
    %1057 = vrot.lane.b32.xlu0 %v173, 112
    %v1058 = vpop.permute.xlu0 %1057
    %v1060 = vmul.f32 %v155, %v1058
    %v1061 = vmul.f32 %v157, %v1058
    %1062 = vrot.lane.b32.xlu0 %v174, 116
    %v1063 = vpop.permute.xlu0 %1062
    %v1065 = vmul.f32 %v155, %v1063
    %v1066 = vmul.f32 %v157, %v1063
    %1069 = vrot.lane.b32.xlu0 %v1065, 124
    %v1070 = vpop.permute.xlu0 %1069
    %1071 = vrot.lane.b32.xlu0 %v1066, 124
    %v1072 = vpop.permute.xlu0 %1071
    %v1075 = vsub.f32 %v1060, %v1070
    %v1076 = vsub.f32 %v1061, %v1072
    %1077 = vrot.lane.b32.xlu0 %v174, 112
    %v1078 = vpop.permute.xlu0 %1077
    %v1080 = vmul.f32 %v155, %v1078
    %v1081 = vmul.f32 %v157, %v1078
    %1082 = vrot.lane.b32.xlu0 %v173, 116
    %v1083 = vpop.permute.xlu0 %1082
    %v1085 = vmul.f32 %v155, %v1083
    %v1086 = vmul.f32 %v157, %v1083
    %1089 = vrot.lane.b32.xlu0 %v1085, 124
    %v1090 = vpop.permute.xlu0 %1089
    %1091 = vrot.lane.b32.xlu0 %v1086, 124
    %v1092 = vpop.permute.xlu0 %1091
    %v1095 = vadd.f32 %v1080, %v1090
    %v1096 = vadd.f32 %v1081, %v1092
    %1099 = vrot.lane.b32.xlu0 %v1075, 16
    %v1100 = vpop.permute.xlu0 %1099
    %1101 = vrot.lane.b32.xlu0 %v1076, 16
    %v1102 = vpop.permute.xlu0 %1101
    %1107 = vrot.lane.b32.xlu0 %v1095, 20
    %v1108 = vpop.permute.xlu0 %1107
    %1109 = vrot.lane.b32.xlu0 %v1096, 20
    %v1110 = vpop.permute.xlu0 %1109
    %v1113 = vsel %vm219, %v1100, %v1108
    %v1114 = vsel %vm219, %v1102, %v1110
    %1115 = vrot.lane.b32.xlu0 %v173, 120
    %v1116 = vpop.permute.xlu0 %1115
    %v1118 = vmul.f32 %v155, %v1116
    %v1119 = vmul.f32 %v157, %v1116
    %1120 = vrot.lane.b32.xlu0 %v174, 124
    %v1121 = vpop.permute.xlu0 %1120
    %v1123 = vmul.f32 %v155, %v1121
    %v1124 = vmul.f32 %v157, %v1121
    %1127 = vrot.lane.b32.xlu0 %v1123, 124
    %v1128 = vpop.permute.xlu0 %1127
    %1129 = vrot.lane.b32.xlu0 %v1124, 124
    %v1130 = vpop.permute.xlu0 %1129
    %v1133 = vsub.f32 %v1118, %v1128
    %v1134 = vsub.f32 %v1119, %v1130
    %1135 = vrot.lane.b32.xlu0 %v174, 120
    %v1136 = vpop.permute.xlu0 %1135
    %v1138 = vmul.f32 %v155, %v1136
    %v1139 = vmul.f32 %v157, %v1136
    %1140 = vrot.lane.b32.xlu0 %v173, 124
    %v1141 = vpop.permute.xlu0 %1140
    %v1143 = vmul.f32 %v155, %v1141
    %v1144 = vmul.f32 %v157, %v1141
    %1147 = vrot.lane.b32.xlu0 %v1143, 124
    %v1148 = vpop.permute.xlu0 %1147
    %1149 = vrot.lane.b32.xlu0 %v1144, 124
    %v1150 = vpop.permute.xlu0 %1149
    %v1153 = vadd.f32 %v1138, %v1148
    %v1154 = vadd.f32 %v1139, %v1150
    %1157 = vrot.lane.b32.xlu0 %v1133, 8
    %v1158 = vpop.permute.xlu0 %1157
    %1159 = vrot.lane.b32.xlu0 %v1134, 8
    %v1160 = vpop.permute.xlu0 %1159
    %1165 = vrot.lane.b32.xlu0 %v1153, 12
    %v1166 = vpop.permute.xlu0 %1165
    %1167 = vrot.lane.b32.xlu0 %v1154, 12
    %v1168 = vpop.permute.xlu0 %1167
    %v1171 = vsel %vm219, %v1158, %v1166
    %v1172 = vsel %vm219, %v1160, %v1168
    %1175 = vrot.lane.b32.xlu0 %v823, 8
    %v1176 = vpop.permute.xlu0 %1175
    %1177 = vrot.lane.b32.xlu0 %v824, 8
    %v1178 = vpop.permute.xlu0 %1177
    %1183 = vrot.lane.b32.xlu0 %v881, 16
    %v1184 = vpop.permute.xlu0 %1183
    %1185 = vrot.lane.b32.xlu0 %v882, 16
    %v1186 = vpop.permute.xlu0 %1185
    %1191 = vrot.lane.b32.xlu0 %v939, 24
    %v1192 = vpop.permute.xlu0 %1191
    %1193 = vrot.lane.b32.xlu0 %v940, 24
    %v1194 = vpop.permute.xlu0 %1193
    %1199 = vrot.lane.b32.xlu0 %v997, 32
    %v1200 = vpop.permute.xlu0 %1199
    %1201 = vrot.lane.b32.xlu0 %v998, 32
    %v1202 = vpop.permute.xlu0 %1201
    %1207 = vrot.lane.b32.xlu0 %v1055, 40
    %v1208 = vpop.permute.xlu0 %1207
    %1209 = vrot.lane.b32.xlu0 %v1056, 40
    %v1210 = vpop.permute.xlu0 %1209
    %1215 = vrot.lane.b32.xlu0 %v1113, 48
    %v1216 = vpop.permute.xlu0 %1215
    %1217 = vrot.lane.b32.xlu0 %v1114, 48
    %v1218 = vpop.permute.xlu0 %1217
    %1223 = vrot.lane.b32.xlu0 %v1171, 56
    %v1224 = vpop.permute.xlu0 %1223
    %1225 = vrot.lane.b32.xlu0 %v1172, 56
    %v1226 = vpop.permute.xlu0 %1225
    %v1229 = vsel %vm684, %v765, %v1176
    %v1230 = vsel %vm684, %v766, %v1178
    %v1231 = vsel %vm687, %v1229, %v1184
    %v1232 = vsel %vm687, %v1230, %v1186
    %v1233 = vsel %vm690, %v1231, %v1192
    %v1234 = vsel %vm690, %v1232, %v1194
    %v1235 = vsel %vm49, %v1233, %v1200
    %v1236 = vsel %vm49, %v1234, %v1202
    %v1237 = vsel %vm695, %v1235, %v1208
    %v1238 = vsel %vm695, %v1236, %v1210
    %v1239 = vsel %vm698, %v1237, %v1216
    %v1240 = vsel %vm698, %v1238, %v1218
    %v1241 = vsel %vm701, %v1239, %v1224
    %v1242 = vsel %vm701, %v1240, %v1226
    %v1243 = vpack.c.bf16 %v1241, %v1241
    %v1244 = vpack.c.bf16 %v1242, %v1242
    %1245 = vst.msk [vmem:[#allocation6] sm:$0xf] %vm706, %v1243
    %1246 = vst.msk [vmem:[#allocation6 + $0x4] sm:$0xf] %vm706, %v1244
    %v1247 = vpack.c.bf16 %v169, %v169
    %v1248 = vpack.c.bf16 %v171, %v171
    %vm1249 = vcmask 257024
    %1250 = vst.msk [vmem:[#allocation8] sm:$0xf] %vm1249, %v1247
    %1251 = vst.msk [vmem:[#allocation8 + $0x4] sm:$0xf] %vm1249, %v1248
    // Predicated region
    $region30: #{tpu_custom_call.1} parent=1 // pred_check
      _
    $region31: #{tpu_custom_call.1} parent=1 // pred_check_branch
      %1253 = sbr.rel (0) target = $region33
    $region32: #{tpu_custom_call.1} parent=1 // pred_region
      %1255 = vsyncadd [#allocation4], 0
      %s1256 = sshll.u32 [#allocation5], 4
      %s1257 = int_to_ptr.vmem [resolvable:$true] %s1256
      %s1258 = sshll.u32 %s6, 4
      %s1259 = int_to_ptr.hbm [resolvable:$true] %s1258
      %1264 = dma.vmem_to_hbm [thread:$0]  %s1257, 128, %s1259, [#allocation4], 64, 64, 4
    $region33: #{tpu_custom_call.1} parent=1 // pred_fallthru
      _
    // Predicated region
    $region34: #{tpu_custom_call.1} parent=1 // pred_check
      _
    $region35: #{tpu_custom_call.1} parent=1 // pred_check_branch
      %1266 = sbr.rel (0) target = $region37
    $region36: #{tpu_custom_call.1} parent=1 // pred_region
      %1268 = vsyncadd [#allocation7], 0
      %s1269 = sshll.u32 [#allocation6], 4
      %s1270 = int_to_ptr.vmem [resolvable:$true] %s1269
      %s1271 = sshll.u32 %s7, 4
      %s1272 = int_to_ptr.hbm [resolvable:$true] %s1271
      %1277 = dma.vmem_to_hbm [thread:$0]  %s1270, 128, %s1272, [#allocation7], 64, 64, 4
    $region37: #{tpu_custom_call.1} parent=1 // pred_fallthru
      _
    // Predicated region
    $region38: #{tpu_custom_call.1} parent=1 // pred_check
      _
    $region39: #{tpu_custom_call.1} parent=1 // pred_check_branch
      %1279 = sbr.rel (0) target = $region41
    $region40: #{tpu_custom_call.1} parent=1 // pred_region
      %1281 = vsyncadd [#allocation7], 0
      %s1282 = sshll.u32 [#allocation8], 4
      %s1283 = int_to_ptr.vmem [resolvable:$true] %s1282
      %s1284 = sshll.u32 %s8, 4
      %s1285 = int_to_ptr.hbm [resolvable:$true] %s1284
      %1290 = dma.vmem_to_hbm [thread:$0]  %s1283, 128, %s1285, [#allocation7], 64, 64, 4
    $region41: #{tpu_custom_call.1} parent=1 // pred_fallthru
      _
    // Predicated region
    $region42: #{tpu_custom_call.1} parent=1 // pred_check
      _
    $region43: #{tpu_custom_call.1} parent=1 // pred_check_branch
      %1292 = sbr.rel (0) target = $region45
    $region44: #{tpu_custom_call.1} parent=1 // pred_region
      %1294 = dma.done [#allocation4], 128
    $region45: #{tpu_custom_call.1} parent=1 // pred_fallthru
      _
    // Predicated region
    $region46: #{tpu_custom_call.1} parent=1 // pred_check
      _
    $region47: #{tpu_custom_call.1} parent=1 // pred_check_branch
      %1296 = sbr.rel (0) target = $region49
    $region48: #{tpu_custom_call.1} parent=1 // pred_region
      %1298 = dma.done [#allocation7], 128
    $region49: #{tpu_custom_call.1} parent=1 // pred_fallthru
      _
    // Predicated region
    $region50: #{tpu_custom_call.1} parent=1 // pred_check
      _
    $region51: #{tpu_custom_call.1} parent=1 // pred_check_branch
      %1300 = sbr.rel (0) target = $region53
    $region52: #{tpu_custom_call.1} parent=1 // pred_region
      %1302 = dma.done [#allocation7], 128
    $region53: #{tpu_custom_call.1} parent=1 // pred_fallthru
      _
    %1303 = vsyncpa [#allocation3], 1
    %1304 = vsyncpa [#allocation4], 1
    %1305 = vsyncpa [#allocation7], 1

</llo_original>
